<compile_context>
chip_gen: v5e
topology: v5e:2x2
jax: 0.10.0
libtpu: 0.0.40
codegen_flags: <defaults>
</compile_context>

<pallas_src>
import functools

import numpy as np

import jax
import jax.numpy as jnp
from jax.experimental import pallas as pl
from jax.experimental.pallas import tpu as pltpu


def _make_tap_masks(H, W, K):
    """(K*K, 1, H*W) float32 {0,1} masks: for tap (dh,dw), which output pixels
    have a valid (in-image) source pixel under 'same' zero padding."""
    p0 = K // 2
    rows = np.arange(H)[:, None]
    cols = np.arange(W)[None, :]
    ms = []
    for dh in range(K):
        for dw in range(K):
            sh, sw = dh - p0, dw - p0
            valid = ((rows + sh >= 0) & (rows + sh < H) &
                     (cols + sw >= 0) & (cols + sw < W))
            ms.append(valid.reshape(1, H * W))
    return jnp.asarray(np.stack(ms, axis=0).astype(np.float32))


def _resblock_kernel(x_ref, w1_ref, b1_ref, w2_ref, b2_ref, m_ref, o_ref,
                     *, H, W, C, K, res_scale):
    """One batch element per grid step, lane-dense (C, H*W) layout.

    x_ref  : (1, C, P)      input image, P = H*W (pixels on lanes)
    w*_ref : (K*K, C, C)    per-tap transposed weights: w[tap, c_out, c_in]
    b*_ref : (C, 1)         conv biases
    m_ref  : (K*K, 1, P)    {0,1} validity masks ('same' zero padding)
    o_ref  : (1, C, P)      output image
    """
    P = H * W
    p0 = K // 2
    x = x_ref[0].astype(jnp.float32)                            # (C, P)

    def conv(a, w_ref, b_ref):
        # 'same' KxK conv = sum of K*K shifted taps.  Each tap rotates the
        # flattened image on the lane axis (XLU), zeroes pixels whose source
        # falls outside the image, then does a (C_out,C_in) @ (C_in,P) matmul
        # so the accumulator stays lane-dense (last dim P, multiple of 128).
        acc = jnp.zeros((C, P), jnp.float32)
        for dh in range(K):
            for dw in range(K):
                tap = dh * K + dw
                s = (dh - p0) * W + (dw - p0)                   # flat src offset
                shifted = a if s == 0 else pltpu.roll(a, shift=(-s) % P, axis=1)
                shifted = shifted * m_ref[tap]                  # mask padded srcs
                acc = acc + jnp.dot(w_ref[tap], shifted,
                                    preferred_element_type=jnp.float32)
        return acc + b_ref[...]                                 # (C,1) broadcast

    h1 = jnp.maximum(conv(x, w1_ref, b1_ref), 0.0)              # conv1+bias+ReLU
    y = conv(h1, w2_ref, b2_ref) * res_scale + x                # conv2+scale+skip
    o_ref[0] = y.astype(o_ref.dtype)


def resblock_forward(x_nchw, w1, b1, w2, b2, *, res_scale=1.0):
    """x_nchw: (N, C, H, W); w*: (K, K, C_in, C_out) HWIO; b*: (C,). Returns NCHW."""
    N, C, H, W = x_nchw.shape
    K = w1.shape[0]
    P = H * W

    # Free reshape (contiguous last dims) -- no transpose passes over HBM.
    x = x_nchw.reshape(N, C, P).astype(jnp.float32)

    # Per-tap transposed weights: wt[tap, c_out, c_in] = w[dh, dw, c_in, c_out].
    w1t = jnp.transpose(w1.reshape(K * K, C, C), (0, 2, 1)).astype(jnp.float32)
    w2t = jnp.transpose(w2.reshape(K * K, C, C), (0, 2, 1)).astype(jnp.float32)
    b1c = b1.reshape(C, 1).astype(jnp.float32)
    b2c = b2.reshape(C, 1).astype(jnp.float32)
    masks = _make_tap_masks(H, W, K)                            # (K*K, 1, P)

    kern = functools.partial(_resblock_kernel, H=H, W=W, C=C, K=K,
                             res_scale=float(res_scale))

    out = pl.pallas_call(
        kern,
        out_shape=jax.ShapeDtypeStruct((N, C, P), jnp.float32),
        grid_spec=pltpu.PrefetchScalarGridSpec(
            num_scalar_prefetch=0,
            grid=(N,),
            in_specs=[
                pl.BlockSpec((1, C, P), lambda n: (n, 0, 0)),      # x
                pl.BlockSpec((K * K, C, C), lambda n: (0, 0, 0)),  # w1t (resident)
                pl.BlockSpec((C, 1), lambda n: (0, 0)),            # b1
                pl.BlockSpec((K * K, C, C), lambda n: (0, 0, 0)),  # w2t (resident)
                pl.BlockSpec((C, 1), lambda n: (0, 0)),            # b2
                pl.BlockSpec((K * K, 1, P), lambda n: (0, 0, 0)),  # masks (resident)
            ],
            out_specs=pl.BlockSpec((1, C, P), lambda n: (n, 0, 0)),
        ),
        compiler_params=pltpu.CompilerParams(
            dimension_semantics=("parallel",)),
    )(x, w1t, b1c, w2t, b2c, masks)

    return out.reshape(N, C, H, W)


def resblock_ref(x_nchw, w1, b1, w2, b2, *, res_scale=1.0):
    """Pure-JAX reference (lax conv), same semantics as the PyTorch module."""
    N, C, H, W = x_nchw.shape
    dn = ("NCHW", "HWIO", "NCHW")
    h = jax.lax.conv_general_dilated(x_nchw, w1, (1, 1), "SAME",
                                     dimension_numbers=dn) + b1.reshape(1, C, 1, 1)
    h = jnp.maximum(h, 0.0)
    h = jax.lax.conv_general_dilated(h, w2, (1, 1), "SAME",
                                     dimension_numbers=dn) + b2.reshape(1, C, 1, 1)
    return h * res_scale + x_nchw


if __name__ == "__main__":
    # Module config: n_feats=4, kernel_size=3, bias=True, bn=False, act=ReLU,
    # res_scale=1 (defaults).
    N, C, H, W, K = 2, 4, 16, 16, 3
    res_scale = 1.0

    key = jax.random.PRNGKey(0)
    kx, kw1, kb1, kw2, kb2 = jax.random.split(key, 5)

    x = jax.random.normal(kx, (N, C, H, W), dtype=jnp.float32)
    # Deterministic synthetic weights (HWIO layout), roughly Conv2d-init scale.
    fan_in = C * K * K
    bound = 1.0 / (fan_in ** 0.5)
    w1 = jax.random.uniform(kw1, (K, K, C, C), jnp.float32, -bound, bound)
    b1 = jax.random.uniform(kb1, (C,), jnp.float32, -bound, bound)
    w2 = jax.random.uniform(kw2, (K, K, C, C), jnp.float32, -bound, bound)
    b2 = jax.random.uniform(kb2, (C,), jnp.float32, -bound, bound)

    out = resblock_forward(x, w1, b1, w2, b2, res_scale=res_scale)
    out = jax.block_until_ready(out)

    ref = resblock_ref(x, w1, b1, w2, b2, res_scale=res_scale)
    assert out.shape == (N, C, H, W)
    assert jnp.allclose(out, ref, atol=1e-4, rtol=1e-4), "mismatch vs reference"

    print("KERNEL_OK")
</pallas_src>

<mosaic_0001>
module attributes {stable_mosaic.version = 11 : i64} {
  func.func @_resblock_kernel(%arg0: i32, %arg1: memref<1x4x256xf32, #tpu.memory_space<vmem>>, %arg2: memref<9x4x4xf32, #tpu.memory_space<vmem>>, %arg3: memref<4x1xf32, #tpu.memory_space<vmem>>, %arg4: memref<9x4x4xf32, #tpu.memory_space<vmem>>, %arg5: memref<4x1xf32, #tpu.memory_space<vmem>>, %arg6: memref<9x1x256xf32, #tpu.memory_space<vmem>>, %arg7: memref<1x4x256xf32, #tpu.memory_space<vmem>>) attributes {dimension_semantics = [#tpu.dimension_semantics<parallel>], iteration_bounds = array<i64: 2>, scalar_prefetch = 0 : i64, scratch_operands = 0 : i64, tpu.core_type = #tpu.core_type<tc>, window_params = [{transform_indices = @transform_0, window_bounds = array<i64: 1, 4, 256>}, {pipeline_mode = #tpu.pipeline_mode<synchronous>, transform_indices = @transform_1, window_bounds = array<i64: 9, 4, 4>}, {pipeline_mode = #tpu.pipeline_mode<synchronous>, transform_indices = @transform_2, window_bounds = array<i64: 4, 1>}, {pipeline_mode = #tpu.pipeline_mode<synchronous>, transform_indices = @transform_3, window_bounds = array<i64: 9, 4, 4>}, {pipeline_mode = #tpu.pipeline_mode<synchronous>, transform_indices = @transform_4, window_bounds = array<i64: 4, 1>}, {pipeline_mode = #tpu.pipeline_mode<synchronous>, transform_indices = @transform_5, window_bounds = array<i64: 9, 1, 256>}, {transform_indices = @transform_6, window_bounds = array<i64: 1, 4, 256>}]} {
    %c0 = arith.constant 0 : index
    %c0_0 = arith.constant 0 : index
    %c0_1 = arith.constant 0 : index
    %0 = vector.load %arg1[%c0, %c0_0, %c0_1] : memref<1x4x256xf32, #tpu.memory_space<vmem>>, vector<1x4x256xf32>
    %1 = vector.shape_cast %0 : vector<1x4x256xf32> to vector<4x256xf32>
    %cst = arith.constant 0.000000e+00 : f32
    %2 = vector.broadcast %cst : f32 to vector<4x256xf32>
    %c17_i32 = arith.constant 17 : i32
    %3 = tpu.dynamic_rotate %1 by %c17_i32 dim 1 : vector<4x256xf32>, i32 -> vector<4x256xf32>
    %c0_2 = arith.constant 0 : index
    %c0_3 = arith.constant 0 : index
    %c0_4 = arith.constant 0 : index
    %4 = vector.load %arg6[%c0_2, %c0_3, %c0_4] : memref<9x1x256xf32, #tpu.memory_space<vmem>>, vector<1x1x256xf32>
    %5 = vector.shape_cast %4 : vector<1x1x256xf32> to vector<1x256xf32>
    %6 = vector.broadcast %5 : vector<1x256xf32> to vector<4x256xf32>
    %7 = arith.mulf %3, %6 : vector<4x256xf32>
    %c0_5 = arith.constant 0 : index
    %c0_6 = arith.constant 0 : index
    %c0_7 = arith.constant 0 : index
    %8 = vector.load %arg2[%c0_5, %c0_6, %c0_7] : memref<9x4x4xf32, #tpu.memory_space<vmem>>, vector<1x4x4xf32>
    %9 = vector.shape_cast %8 : vector<1x4x4xf32> to vector<4x4xf32>
    %cst_8 = arith.constant dense<0.000000e+00> : vector<4x256xf32>
    %10 = tpu.matmul %9, %7, %cst_8 {dimension_numbers = #tpu.dot_dimension_numbers<[1], [0], [0], [1], [0, 0, 1, 1], [], []>} : vector<4x4xf32>, vector<4x256xf32>, vector<4x256xf32> -> vector<4x256xf32>
    %11 = arith.addf %2, %10 : vector<4x256xf32>
    %c16_i32 = arith.constant 16 : i32
    %12 = tpu.dynamic_rotate %1 by %c16_i32 dim 1 : vector<4x256xf32>, i32 -> vector<4x256xf32>
    %c1 = arith.constant 1 : index
    %c0_9 = arith.constant 0 : index
    %c0_10 = arith.constant 0 : index
    %13 = vector.load %arg6[%c1, %c0_9, %c0_10] : memref<9x1x256xf32, #tpu.memory_space<vmem>>, vector<1x1x256xf32>
    %14 = vector.shape_cast %13 : vector<1x1x256xf32> to vector<1x256xf32>
    %15 = vector.broadcast %14 : vector<1x256xf32> to vector<4x256xf32>
    %16 = arith.mulf %12, %15 : vector<4x256xf32>
    %c1_11 = arith.constant 1 : index
    %c0_12 = arith.constant 0 : index
    %c0_13 = arith.constant 0 : index
    %17 = vector.load %arg2[%c1_11, %c0_12, %c0_13] : memref<9x4x4xf32, #tpu.memory_space<vmem>>, vector<1x4x4xf32>
    %18 = vector.shape_cast %17 : vector<1x4x4xf32> to vector<4x4xf32>
    %cst_14 = arith.constant dense<0.000000e+00> : vector<4x256xf32>
    %19 = tpu.matmul %18, %16, %cst_14 {dimension_numbers = #tpu.dot_dimension_numbers<[1], [0], [0], [1], [0, 0, 1, 1], [], []>} : vector<4x4xf32>, vector<4x256xf32>, vector<4x256xf32> -> vector<4x256xf32>
    %20 = arith.addf %11, %19 : vector<4x256xf32>
    %c15_i32 = arith.constant 15 : i32
    %21 = tpu.dynamic_rotate %1 by %c15_i32 dim 1 : vector<4x256xf32>, i32 -> vector<4x256xf32>
    %c2 = arith.constant 2 : index
    %c0_15 = arith.constant 0 : index
    %c0_16 = arith.constant 0 : index
    %22 = vector.load %arg6[%c2, %c0_15, %c0_16] : memref<9x1x256xf32, #tpu.memory_space<vmem>>, vector<1x1x256xf32>
    %23 = vector.shape_cast %22 : vector<1x1x256xf32> to vector<1x256xf32>
    %24 = vector.broadcast %23 : vector<1x256xf32> to vector<4x256xf32>
    %25 = arith.mulf %21, %24 : vector<4x256xf32>
    %c2_17 = arith.constant 2 : index
    %c0_18 = arith.constant 0 : index
    %c0_19 = arith.constant 0 : index
    %26 = vector.load %arg2[%c2_17, %c0_18, %c0_19] : memref<9x4x4xf32, #tpu.memory_space<vmem>>, vector<1x4x4xf32>
    %27 = vector.shape_cast %26 : vector<1x4x4xf32> to vector<4x4xf32>
    %cst_20 = arith.constant dense<0.000000e+00> : vector<4x256xf32>
    %28 = tpu.matmul %27, %25, %cst_20 {dimension_numbers = #tpu.dot_dimension_numbers<[1], [0], [0], [1], [0, 0, 1, 1], [], []>} : vector<4x4xf32>, vector<4x256xf32>, vector<4x256xf32> -> vector<4x256xf32>
    %29 = arith.addf %20, %28 : vector<4x256xf32>
    %c1_i32 = arith.constant 1 : i32
    %30 = tpu.dynamic_rotate %1 by %c1_i32 dim 1 : vector<4x256xf32>, i32 -> vector<4x256xf32>
    %c3 = arith.constant 3 : index
    %c0_21 = arith.constant 0 : index
    %c0_22 = arith.constant 0 : index
    %31 = vector.load %arg6[%c3, %c0_21, %c0_22] : memref<9x1x256xf32, #tpu.memory_space<vmem>>, vector<1x1x256xf32>
    %32 = vector.shape_cast %31 : vector<1x1x256xf32> to vector<1x256xf32>
    %33 = vector.broadcast %32 : vector<1x256xf32> to vector<4x256xf32>
    %34 = arith.mulf %30, %33 : vector<4x256xf32>
    %c3_23 = arith.constant 3 : index
    %c0_24 = arith.constant 0 : index
    %c0_25 = arith.constant 0 : index
    %35 = vector.load %arg2[%c3_23, %c0_24, %c0_25] : memref<9x4x4xf32, #tpu.memory_space<vmem>>, vector<1x4x4xf32>
    %36 = vector.shape_cast %35 : vector<1x4x4xf32> to vector<4x4xf32>
    %cst_26 = arith.constant dense<0.000000e+00> : vector<4x256xf32>
    %37 = tpu.matmul %36, %34, %cst_26 {dimension_numbers = #tpu.dot_dimension_numbers<[1], [0], [0], [1], [0, 0, 1, 1], [], []>} : vector<4x4xf32>, vector<4x256xf32>, vector<4x256xf32> -> vector<4x256xf32>
    %38 = arith.addf %29, %37 : vector<4x256xf32>
    %c4 = arith.constant 4 : index
    %c0_27 = arith.constant 0 : index
    %c0_28 = arith.constant 0 : index
    %39 = vector.load %arg6[%c4, %c0_27, %c0_28] : memref<9x1x256xf32, #tpu.memory_space<vmem>>, vector<1x1x256xf32>
    %40 = vector.shape_cast %39 : vector<1x1x256xf32> to vector<1x256xf32>
    %41 = vector.broadcast %40 : vector<1x256xf32> to vector<4x256xf32>
    %42 = arith.mulf %1, %41 : vector<4x256xf32>
    %c4_29 = arith.constant 4 : index
    %c0_30 = arith.constant 0 : index
    %c0_31 = arith.constant 0 : index
    %43 = vector.load %arg2[%c4_29, %c0_30, %c0_31] : memref<9x4x4xf32, #tpu.memory_space<vmem>>, vector<1x4x4xf32>
    %44 = vector.shape_cast %43 : vector<1x4x4xf32> to vector<4x4xf32>
    %cst_32 = arith.constant dense<0.000000e+00> : vector<4x256xf32>
    %45 = tpu.matmul %44, %42, %cst_32 {dimension_numbers = #tpu.dot_dimension_numbers<[1], [0], [0], [1], [0, 0, 1, 1], [], []>} : vector<4x4xf32>, vector<4x256xf32>, vector<4x256xf32> -> vector<4x256xf32>
    %46 = arith.addf %38, %45 : vector<4x256xf32>
    %c255_i32 = arith.constant 255 : i32
    %47 = tpu.dynamic_rotate %1 by %c255_i32 dim 1 : vector<4x256xf32>, i32 -> vector<4x256xf32>
    %c5 = arith.constant 5 : index
    %c0_33 = arith.constant 0 : index
    %c0_34 = arith.constant 0 : index
    %48 = vector.load %arg6[%c5, %c0_33, %c0_34] : memref<9x1x256xf32, #tpu.memory_space<vmem>>, vector<1x1x256xf32>
    %49 = vector.shape_cast %48 : vector<1x1x256xf32> to vector<1x256xf32>
    %50 = vector.broadcast %49 : vector<1x256xf32> to vector<4x256xf32>
    %51 = arith.mulf %47, %50 : vector<4x256xf32>
    %c5_35 = arith.constant 5 : index
    %c0_36 = arith.constant 0 : index
    %c0_37 = arith.constant 0 : index
    %52 = vector.load %arg2[%c5_35, %c0_36, %c0_37] : memref<9x4x4xf32, #tpu.memory_space<vmem>>, vector<1x4x4xf32>
    %53 = vector.shape_cast %52 : vector<1x4x4xf32> to vector<4x4xf32>
    %cst_38 = arith.constant dense<0.000000e+00> : vector<4x256xf32>
    %54 = tpu.matmul %53, %51, %cst_38 {dimension_numbers = #tpu.dot_dimension_numbers<[1], [0], [0], [1], [0, 0, 1, 1], [], []>} : vector<4x4xf32>, vector<4x256xf32>, vector<4x256xf32> -> vector<4x256xf32>
    %55 = arith.addf %46, %54 : vector<4x256xf32>
    %c241_i32 = arith.constant 241 : i32
    %56 = tpu.dynamic_rotate %1 by %c241_i32 dim 1 : vector<4x256xf32>, i32 -> vector<4x256xf32>
    %c6 = arith.constant 6 : index
    %c0_39 = arith.constant 0 : index
    %c0_40 = arith.constant 0 : index
    %57 = vector.load %arg6[%c6, %c0_39, %c0_40] : memref<9x1x256xf32, #tpu.memory_space<vmem>>, vector<1x1x256xf32>
    %58 = vector.shape_cast %57 : vector<1x1x256xf32> to vector<1x256xf32>
    %59 = vector.broadcast %58 : vector<1x256xf32> to vector<4x256xf32>
    %60 = arith.mulf %56, %59 : vector<4x256xf32>
    %c6_41 = arith.constant 6 : index
    %c0_42 = arith.constant 0 : index
    %c0_43 = arith.constant 0 : index
    %61 = vector.load %arg2[%c6_41, %c0_42, %c0_43] : memref<9x4x4xf32, #tpu.memory_space<vmem>>, vector<1x4x4xf32>
    %62 = vector.shape_cast %61 : vector<1x4x4xf32> to vector<4x4xf32>
    %cst_44 = arith.constant dense<0.000000e+00> : vector<4x256xf32>
    %63 = tpu.matmul %62, %60, %cst_44 {dimension_numbers = #tpu.dot_dimension_numbers<[1], [0], [0], [1], [0, 0, 1, 1], [], []>} : vector<4x4xf32>, vector<4x256xf32>, vector<4x256xf32> -> vector<4x256xf32>
    %64 = arith.addf %55, %63 : vector<4x256xf32>
    %c240_i32 = arith.constant 240 : i32
    %65 = tpu.dynamic_rotate %1 by %c240_i32 dim 1 : vector<4x256xf32>, i32 -> vector<4x256xf32>
    %c7 = arith.constant 7 : index
    %c0_45 = arith.constant 0 : index
    %c0_46 = arith.constant 0 : index
    %66 = vector.load %arg6[%c7, %c0_45, %c0_46] : memref<9x1x256xf32, #tpu.memory_space<vmem>>, vector<1x1x256xf32>
    %67 = vector.shape_cast %66 : vector<1x1x256xf32> to vector<1x256xf32>
    %68 = vector.broadcast %67 : vector<1x256xf32> to vector<4x256xf32>
    %69 = arith.mulf %65, %68 : vector<4x256xf32>
    %c7_47 = arith.constant 7 : index
    %c0_48 = arith.constant 0 : index
    %c0_49 = arith.constant 0 : index
    %70 = vector.load %arg2[%c7_47, %c0_48, %c0_49] : memref<9x4x4xf32, #tpu.memory_space<vmem>>, vector<1x4x4xf32>
    %71 = vector.shape_cast %70 : vector<1x4x4xf32> to vector<4x4xf32>
    %cst_50 = arith.constant dense<0.000000e+00> : vector<4x256xf32>
    %72 = tpu.matmul %71, %69, %cst_50 {dimension_numbers = #tpu.dot_dimension_numbers<[1], [0], [0], [1], [0, 0, 1, 1], [], []>} : vector<4x4xf32>, vector<4x256xf32>, vector<4x256xf32> -> vector<4x256xf32>
    %73 = arith.addf %64, %72 : vector<4x256xf32>
    %c239_i32 = arith.constant 239 : i32
    %74 = tpu.dynamic_rotate %1 by %c239_i32 dim 1 : vector<4x256xf32>, i32 -> vector<4x256xf32>
    %c8 = arith.constant 8 : index
    %c0_51 = arith.constant 0 : index
    %c0_52 = arith.constant 0 : index
    %75 = vector.load %arg6[%c8, %c0_51, %c0_52] : memref<9x1x256xf32, #tpu.memory_space<vmem>>, vector<1x1x256xf32>
    %76 = vector.shape_cast %75 : vector<1x1x256xf32> to vector<1x256xf32>
    %77 = vector.broadcast %76 : vector<1x256xf32> to vector<4x256xf32>
    %78 = arith.mulf %74, %77 : vector<4x256xf32>
    %c8_53 = arith.constant 8 : index
    %c0_54 = arith.constant 0 : index
    %c0_55 = arith.constant 0 : index
    %79 = vector.load %arg2[%c8_53, %c0_54, %c0_55] : memref<9x4x4xf32, #tpu.memory_space<vmem>>, vector<1x4x4xf32>
    %80 = vector.shape_cast %79 : vector<1x4x4xf32> to vector<4x4xf32>
    %cst_56 = arith.constant dense<0.000000e+00> : vector<4x256xf32>
    %81 = tpu.matmul %80, %78, %cst_56 {dimension_numbers = #tpu.dot_dimension_numbers<[1], [0], [0], [1], [0, 0, 1, 1], [], []>} : vector<4x4xf32>, vector<4x256xf32>, vector<4x256xf32> -> vector<4x256xf32>
    %82 = arith.addf %73, %81 : vector<4x256xf32>
    %c0_57 = arith.constant 0 : index
    %c0_58 = arith.constant 0 : index
    %83 = vector.load %arg3[%c0_57, %c0_58] : memref<4x1xf32, #tpu.memory_space<vmem>>, vector<4x1xf32>
    %84 = vector.broadcast %83 : vector<4x1xf32> to vector<4x256xf32>
    %85 = arith.addf %82, %84 : vector<4x256xf32>
    %cst_59 = arith.constant 0.000000e+00 : f32
    %86 = vector.broadcast %cst_59 : f32 to vector<4x256xf32>
    %87 = arith.maximumf %85, %86 : vector<4x256xf32>
    %cst_60 = arith.constant 0.000000e+00 : f32
    %88 = vector.broadcast %cst_60 : f32 to vector<4x256xf32>
    %c17_i32_61 = arith.constant 17 : i32
    %89 = tpu.dynamic_rotate %87 by %c17_i32_61 dim 1 : vector<4x256xf32>, i32 -> vector<4x256xf32>
    %c0_62 = arith.constant 0 : index
    %c0_63 = arith.constant 0 : index
    %c0_64 = arith.constant 0 : index
    %90 = vector.load %arg6[%c0_62, %c0_63, %c0_64] : memref<9x1x256xf32, #tpu.memory_space<vmem>>, vector<1x1x256xf32>
    %91 = vector.shape_cast %90 : vector<1x1x256xf32> to vector<1x256xf32>
    %92 = vector.broadcast %91 : vector<1x256xf32> to vector<4x256xf32>
    %93 = arith.mulf %89, %92 : vector<4x256xf32>
    %c0_65 = arith.constant 0 : index
    %c0_66 = arith.constant 0 : index
    %c0_67 = arith.constant 0 : index
    %94 = vector.load %arg4[%c0_65, %c0_66, %c0_67] : memref<9x4x4xf32, #tpu.memory_space<vmem>>, vector<1x4x4xf32>
    %95 = vector.shape_cast %94 : vector<1x4x4xf32> to vector<4x4xf32>
    %cst_68 = arith.constant dense<0.000000e+00> : vector<4x256xf32>
    %96 = tpu.matmul %95, %93, %cst_68 {dimension_numbers = #tpu.dot_dimension_numbers<[1], [0], [0], [1], [0, 0, 1, 1], [], []>} : vector<4x4xf32>, vector<4x256xf32>, vector<4x256xf32> -> vector<4x256xf32>
    %97 = arith.addf %88, %96 : vector<4x256xf32>
    %c16_i32_69 = arith.constant 16 : i32
    %98 = tpu.dynamic_rotate %87 by %c16_i32_69 dim 1 : vector<4x256xf32>, i32 -> vector<4x256xf32>
    %c1_70 = arith.constant 1 : index
    %c0_71 = arith.constant 0 : index
    %c0_72 = arith.constant 0 : index
    %99 = vector.load %arg6[%c1_70, %c0_71, %c0_72] : memref<9x1x256xf32, #tpu.memory_space<vmem>>, vector<1x1x256xf32>
    %100 = vector.shape_cast %99 : vector<1x1x256xf32> to vector<1x256xf32>
    %101 = vector.broadcast %100 : vector<1x256xf32> to vector<4x256xf32>
    %102 = arith.mulf %98, %101 : vector<4x256xf32>
    %c1_73 = arith.constant 1 : index
    %c0_74 = arith.constant 0 : index
    %c0_75 = arith.constant 0 : index
    %103 = vector.load %arg4[%c1_73, %c0_74, %c0_75] : memref<9x4x4xf32, #tpu.memory_space<vmem>>, vector<1x4x4xf32>
    %104 = vector.shape_cast %103 : vector<1x4x4xf32> to vector<4x4xf32>
    %cst_76 = arith.constant dense<0.000000e+00> : vector<4x256xf32>
    %105 = tpu.matmul %104, %102, %cst_76 {dimension_numbers = #tpu.dot_dimension_numbers<[1], [0], [0], [1], [0, 0, 1, 1], [], []>} : vector<4x4xf32>, vector<4x256xf32>, vector<4x256xf32> -> vector<4x256xf32>
    %106 = arith.addf %97, %105 : vector<4x256xf32>
    %c15_i32_77 = arith.constant 15 : i32
    %107 = tpu.dynamic_rotate %87 by %c15_i32_77 dim 1 : vector<4x256xf32>, i32 -> vector<4x256xf32>
    %c2_78 = arith.constant 2 : index
    %c0_79 = arith.constant 0 : index
    %c0_80 = arith.constant 0 : index
    %108 = vector.load %arg6[%c2_78, %c0_79, %c0_80] : memref<9x1x256xf32, #tpu.memory_space<vmem>>, vector<1x1x256xf32>
    %109 = vector.shape_cast %108 : vector<1x1x256xf32> to vector<1x256xf32>
    %110 = vector.broadcast %109 : vector<1x256xf32> to vector<4x256xf32>
    %111 = arith.mulf %107, %110 : vector<4x256xf32>
    %c2_81 = arith.constant 2 : index
    %c0_82 = arith.constant 0 : index
    %c0_83 = arith.constant 0 : index
    %112 = vector.load %arg4[%c2_81, %c0_82, %c0_83] : memref<9x4x4xf32, #tpu.memory_space<vmem>>, vector<1x4x4xf32>
    %113 = vector.shape_cast %112 : vector<1x4x4xf32> to vector<4x4xf32>
    %cst_84 = arith.constant dense<0.000000e+00> : vector<4x256xf32>
    %114 = tpu.matmul %113, %111, %cst_84 {dimension_numbers = #tpu.dot_dimension_numbers<[1], [0], [0], [1], [0, 0, 1, 1], [], []>} : vector<4x4xf32>, vector<4x256xf32>, vector<4x256xf32> -> vector<4x256xf32>
    %115 = arith.addf %106, %114 : vector<4x256xf32>
    %c1_i32_85 = arith.constant 1 : i32
    %116 = tpu.dynamic_rotate %87 by %c1_i32_85 dim 1 : vector<4x256xf32>, i32 -> vector<4x256xf32>
    %c3_86 = arith.constant 3 : index
    %c0_87 = arith.constant 0 : index
    %c0_88 = arith.constant 0 : index
    %117 = vector.load %arg6[%c3_86, %c0_87, %c0_88] : memref<9x1x256xf32, #tpu.memory_space<vmem>>, vector<1x1x256xf32>
    %118 = vector.shape_cast %117 : vector<1x1x256xf32> to vector<1x256xf32>
    %119 = vector.broadcast %118 : vector<1x256xf32> to vector<4x256xf32>
    %120 = arith.mulf %116, %119 : vector<4x256xf32>
    %c3_89 = arith.constant 3 : index
    %c0_90 = arith.constant 0 : index
    %c0_91 = arith.constant 0 : index
    %121 = vector.load %arg4[%c3_89, %c0_90, %c0_91] : memref<9x4x4xf32, #tpu.memory_space<vmem>>, vector<1x4x4xf32>
    %122 = vector.shape_cast %121 : vector<1x4x4xf32> to vector<4x4xf32>
    %cst_92 = arith.constant dense<0.000000e+00> : vector<4x256xf32>
    %123 = tpu.matmul %122, %120, %cst_92 {dimension_numbers = #tpu.dot_dimension_numbers<[1], [0], [0], [1], [0, 0, 1, 1], [], []>} : vector<4x4xf32>, vector<4x256xf32>, vector<4x256xf32> -> vector<4x256xf32>
    %124 = arith.addf %115, %123 : vector<4x256xf32>
    %c4_93 = arith.constant 4 : index
    %c0_94 = arith.constant 0 : index
    %c0_95 = arith.constant 0 : index
    %125 = vector.load %arg6[%c4_93, %c0_94, %c0_95] : memref<9x1x256xf32, #tpu.memory_space<vmem>>, vector<1x1x256xf32>
    %126 = vector.shape_cast %125 : vector<1x1x256xf32> to vector<1x256xf32>
    %127 = vector.broadcast %126 : vector<1x256xf32> to vector<4x256xf32>
    %128 = arith.mulf %87, %127 : vector<4x256xf32>
    %c4_96 = arith.constant 4 : index
    %c0_97 = arith.constant 0 : index
    %c0_98 = arith.constant 0 : index
    %129 = vector.load %arg4[%c4_96, %c0_97, %c0_98] : memref<9x4x4xf32, #tpu.memory_space<vmem>>, vector<1x4x4xf32>
    %130 = vector.shape_cast %129 : vector<1x4x4xf32> to vector<4x4xf32>
    %cst_99 = arith.constant dense<0.000000e+00> : vector<4x256xf32>
    %131 = tpu.matmul %130, %128, %cst_99 {dimension_numbers = #tpu.dot_dimension_numbers<[1], [0], [0], [1], [0, 0, 1, 1], [], []>} : vector<4x4xf32>, vector<4x256xf32>, vector<4x256xf32> -> vector<4x256xf32>
    %132 = arith.addf %124, %131 : vector<4x256xf32>
    %c255_i32_100 = arith.constant 255 : i32
    %133 = tpu.dynamic_rotate %87 by %c255_i32_100 dim 1 : vector<4x256xf32>, i32 -> vector<4x256xf32>
    %c5_101 = arith.constant 5 : index
    %c0_102 = arith.constant 0 : index
    %c0_103 = arith.constant 0 : index
    %134 = vector.load %arg6[%c5_101, %c0_102, %c0_103] : memref<9x1x256xf32, #tpu.memory_space<vmem>>, vector<1x1x256xf32>
    %135 = vector.shape_cast %134 : vector<1x1x256xf32> to vector<1x256xf32>
    %136 = vector.broadcast %135 : vector<1x256xf32> to vector<4x256xf32>
    %137 = arith.mulf %133, %136 : vector<4x256xf32>
    %c5_104 = arith.constant 5 : index
    %c0_105 = arith.constant 0 : index
    %c0_106 = arith.constant 0 : index
    %138 = vector.load %arg4[%c5_104, %c0_105, %c0_106] : memref<9x4x4xf32, #tpu.memory_space<vmem>>, vector<1x4x4xf32>
    %139 = vector.shape_cast %138 : vector<1x4x4xf32> to vector<4x4xf32>
    %cst_107 = arith.constant dense<0.000000e+00> : vector<4x256xf32>
    %140 = tpu.matmul %139, %137, %cst_107 {dimension_numbers = #tpu.dot_dimension_numbers<[1], [0], [0], [1], [0, 0, 1, 1], [], []>} : vector<4x4xf32>, vector<4x256xf32>, vector<4x256xf32> -> vector<4x256xf32>
    %141 = arith.addf %132, %140 : vector<4x256xf32>
    %c241_i32_108 = arith.constant 241 : i32
    %142 = tpu.dynamic_rotate %87 by %c241_i32_108 dim 1 : vector<4x256xf32>, i32 -> vector<4x256xf32>
    %c6_109 = arith.constant 6 : index
    %c0_110 = arith.constant 0 : index
    %c0_111 = arith.constant 0 : index
    %143 = vector.load %arg6[%c6_109, %c0_110, %c0_111] : memref<9x1x256xf32, #tpu.memory_space<vmem>>, vector<1x1x256xf32>
    %144 = vector.shape_cast %143 : vector<1x1x256xf32> to vector<1x256xf32>
    %145 = vector.broadcast %144 : vector<1x256xf32> to vector<4x256xf32>
    %146 = arith.mulf %142, %145 : vector<4x256xf32>
    %c6_112 = arith.constant 6 : index
    %c0_113 = arith.constant 0 : index
    %c0_114 = arith.constant 0 : index
    %147 = vector.load %arg4[%c6_112, %c0_113, %c0_114] : memref<9x4x4xf32, #tpu.memory_space<vmem>>, vector<1x4x4xf32>
    %148 = vector.shape_cast %147 : vector<1x4x4xf32> to vector<4x4xf32>
    %cst_115 = arith.constant dense<0.000000e+00> : vector<4x256xf32>
    %149 = tpu.matmul %148, %146, %cst_115 {dimension_numbers = #tpu.dot_dimension_numbers<[1], [0], [0], [1], [0, 0, 1, 1], [], []>} : vector<4x4xf32>, vector<4x256xf32>, vector<4x256xf32> -> vector<4x256xf32>
    %150 = arith.addf %141, %149 : vector<4x256xf32>
    %c240_i32_116 = arith.constant 240 : i32
    %151 = tpu.dynamic_rotate %87 by %c240_i32_116 dim 1 : vector<4x256xf32>, i32 -> vector<4x256xf32>
    %c7_117 = arith.constant 7 : index
    %c0_118 = arith.constant 0 : index
    %c0_119 = arith.constant 0 : index
    %152 = vector.load %arg6[%c7_117, %c0_118, %c0_119] : memref<9x1x256xf32, #tpu.memory_space<vmem>>, vector<1x1x256xf32>
    %153 = vector.shape_cast %152 : vector<1x1x256xf32> to vector<1x256xf32>
    %154 = vector.broadcast %153 : vector<1x256xf32> to vector<4x256xf32>
    %155 = arith.mulf %151, %154 : vector<4x256xf32>
    %c7_120 = arith.constant 7 : index
    %c0_121 = arith.constant 0 : index
    %c0_122 = arith.constant 0 : index
    %156 = vector.load %arg4[%c7_120, %c0_121, %c0_122] : memref<9x4x4xf32, #tpu.memory_space<vmem>>, vector<1x4x4xf32>
    %157 = vector.shape_cast %156 : vector<1x4x4xf32> to vector<4x4xf32>
    %cst_123 = arith.constant dense<0.000000e+00> : vector<4x256xf32>
    %158 = tpu.matmul %157, %155, %cst_123 {dimension_numbers = #tpu.dot_dimension_numbers<[1], [0], [0], [1], [0, 0, 1, 1], [], []>} : vector<4x4xf32>, vector<4x256xf32>, vector<4x256xf32> -> vector<4x256xf32>
    %159 = arith.addf %150, %158 : vector<4x256xf32>
    %c239_i32_124 = arith.constant 239 : i32
    %160 = tpu.dynamic_rotate %87 by %c239_i32_124 dim 1 : vector<4x256xf32>, i32 -> vector<4x256xf32>
    %c8_125 = arith.constant 8 : index
    %c0_126 = arith.constant 0 : index
    %c0_127 = arith.constant 0 : index
    %161 = vector.load %arg6[%c8_125, %c0_126, %c0_127] : memref<9x1x256xf32, #tpu.memory_space<vmem>>, vector<1x1x256xf32>
    %162 = vector.shape_cast %161 : vector<1x1x256xf32> to vector<1x256xf32>
    %163 = vector.broadcast %162 : vector<1x256xf32> to vector<4x256xf32>
    %164 = arith.mulf %160, %163 : vector<4x256xf32>
    %c8_128 = arith.constant 8 : index
    %c0_129 = arith.constant 0 : index
    %c0_130 = arith.constant 0 : index
    %165 = vector.load %arg4[%c8_128, %c0_129, %c0_130] : memref<9x4x4xf32, #tpu.memory_space<vmem>>, vector<1x4x4xf32>
    %166 = vector.shape_cast %165 : vector<1x4x4xf32> to vector<4x4xf32>
    %cst_131 = arith.constant dense<0.000000e+00> : vector<4x256xf32>
    %167 = tpu.matmul %166, %164, %cst_131 {dimension_numbers = #tpu.dot_dimension_numbers<[1], [0], [0], [1], [0, 0, 1, 1], [], []>} : vector<4x4xf32>, vector<4x256xf32>, vector<4x256xf32> -> vector<4x256xf32>
    %168 = arith.addf %159, %167 : vector<4x256xf32>
    %c0_132 = arith.constant 0 : index
    %c0_133 = arith.constant 0 : index
    %169 = vector.load %arg5[%c0_132, %c0_133] : memref<4x1xf32, #tpu.memory_space<vmem>>, vector<4x1xf32>
    %170 = vector.broadcast %169 : vector<4x1xf32> to vector<4x256xf32>
    %171 = arith.addf %168, %170 : vector<4x256xf32>
    %cst_134 = arith.constant 1.000000e+00 : f32
    %172 = vector.broadcast %cst_134 : f32 to vector<4x256xf32>
    %173 = arith.mulf %171, %172 : vector<4x256xf32>
    %174 = arith.addf %173, %1 : vector<4x256xf32>
    %c0_135 = arith.constant 0 : index
    %c0_136 = arith.constant 0 : index
    %c0_137 = arith.constant 0 : index
    %175 = vector.load %arg7[%c0_135, %c0_136, %c0_137] : memref<1x4x256xf32, #tpu.memory_space<vmem>>, vector<1x4x256xf32>
    %176 = vector.shape_cast %175 : vector<1x4x256xf32> to vector<4x256xf32>
    %177 = vector.shape_cast %174 : vector<4x256xf32> to vector<1x4x256xf32>
    tpu.vector_store %arg7[%c0_135, %c0_136, %c0_137], %177 {strides = array<i32>} : memref<1x4x256xf32, #tpu.memory_space<vmem>>, vector<1x4x256xf32>,
    return
  }
  func.func @transform_0(%arg0: i32) -> (i32, i32, i32) {
    %c0_i32 = arith.constant 0 : i32
    %c0_i32_0 = arith.constant 0 : i32
    %c0_i32_1 = arith.constant 0 : i32
    return %arg0, %c0_i32, %c0_i32_0 : i32, i32, i32
  }
  func.func @transform_1(%arg0: i32) -> (i32, i32, i32) {
    %c0_i32 = arith.constant 0 : i32
    %c0_i32_0 = arith.constant 0 : i32
    %c0_i32_1 = arith.constant 0 : i32
    %c0_i32_2 = arith.constant 0 : i32
    return %c0_i32, %c0_i32_0, %c0_i32_1 : i32, i32, i32
  }
  func.func @transform_2(%arg0: i32) -> (i32, i32) {
    %c0_i32 = arith.constant 0 : i32
    %c0_i32_0 = arith.constant 0 : i32
    %c0_i32_1 = arith.constant 0 : i32
    return %c0_i32, %c0_i32_0 : i32, i32
  }
  func.func @transform_3(%arg0: i32) -> (i32, i32, i32) {
    %c0_i32 = arith.constant 0 : i32
    %c0_i32_0 = arith.constant 0 : i32
    %c0_i32_1 = arith.constant 0 : i32
    %c0_i32_2 = arith.constant 0 : i32
    return %c0_i32, %c0_i32_0, %c0_i32_1 : i32, i32, i32
  }
  func.func @transform_4(%arg0: i32) -> (i32, i32) {
    %c0_i32 = arith.constant 0 : i32
    %c0_i32_0 = arith.constant 0 : i32
    %c0_i32_1 = arith.constant 0 : i32
    return %c0_i32, %c0_i32_0 : i32, i32
  }
  func.func @transform_5(%arg0: i32) -> (i32, i32, i32) {
    %c0_i32 = arith.constant 0 : i32
    %c0_i32_0 = arith.constant 0 : i32
    %c0_i32_1 = arith.constant 0 : i32
    %c0_i32_2 = arith.constant 0 : i32
    return %c0_i32, %c0_i32_0, %c0_i32_1 : i32, i32, i32
  }
  func.func @transform_6(%arg0: i32) -> (i32, i32, i32) {
    %c0_i32 = arith.constant 0 : i32
    %c0_i32_0 = arith.constant 0 : i32
    %c0_i32_1 = arith.constant 0 : i32
    return %arg0, %c0_i32, %c0_i32_0 : i32, i32, i32
  }
}

</mosaic_0001>

<llo_original>
// kernel: tpu_custom_call.1
$region0: #{tpu_custom_call.1}
  #allocation0 [shape = 'u32[]', space=smem, size = 0x4, offset = 0x4, fixed_abs, tag = 'smem constant byte address 0x4 - core index']
  #allocation1 [shape = 'u32[72,128]{1,0:T(1,128)}', space=vmem, size = 0x9000, scoped, tag = 'internal scratch']
  %s0 = inlined_call_operand.vmem [shape: f32[2,4,256], index: 0, kind: input, shape index: {}]
  %s1 = inlined_call_operand.vmem [shape: f32[9,4,4], index: 1, kind: input, shape index: {}]
  %s2 = inlined_call_operand.vmem [shape: f32[4,1], index: 2, kind: input, shape index: {}]
  %s3 = inlined_call_operand.vmem [shape: f32[9,4,4], index: 3, kind: input, shape index: {}]
  %s4 = inlined_call_operand.vmem [shape: f32[4,1], index: 4, kind: input, shape index: {}]
  %s5 = inlined_call_operand.vmem [shape: f32[9,1,256], index: 5, kind: input, shape index: {}]
  %s6 = inlined_call_operand.hbm [shape: f32[2,4,256], index: 6, kind: output, shape index: {}]
  %s7 = sld [smem:[#allocation0]]
  $region57: #{tpu_custom_call.1} parent=0
    _
  %s9 = ssub.s32 1, %s7
  %s10 = scalar_select 0, %s9, %s7
  $region1: #{tpu_custom_call.1} parent=0
    #allocation2 [shape = 'u8[8192]{0}', space=vmem, size = 0x2000, scoped, tag = 'output window, operand 0']
    #allocation3 [shape = 's32[2]{0}', space=sflag, size = 0x8, scoped, tag = 'scoped memory for tpu_custom_call.1']
    %11 = vsyncpa [#allocation3], 0
    %s12 = scalar_lea.sflag [#allocation3], 1
    %13 = vsyncpa %s12, 0
    loop: start=0, step=1, limit=4
    $region2: #{tpu_custom_call.1} parent=1 // loop_pre_header
      _
    $region3: #{tpu_custom_call.1} parent=1 // loop_header
      %s15 = sphi 0, %s19
      %p16 = scmp.ge.s32.totalorder %s15, 4
      %s25 = sphi 0, %s27
      %s28 = sphi 0, %s25
      %s29 = sphi 0, %s28
      %s45 = sphi 0, %s29
      %s49 = sphi 0, %s49
      %s51 = sphi 0, %s49
      %s52 = sphi 0, %s51
      %s66 = sphi 0, %s52
      %s70 = sphi 0, %s70
      %s72 = sphi 0, %s70
      %s73 = sphi 0, %s72
      %s87 = sphi 0, %s73
      %s91 = sphi 0, %s91
      %s93 = sphi 0, %s91
      %s94 = sphi 0, %s93
      %s108 = sphi 0, %s94
      %s112 = sphi 0, %s112
      %s114 = sphi 0, %s112
      %s115 = sphi 0, %s114
      %s129 = sphi 0, %s115
      %s133 = sphi 0, %s133
      %s135 = sphi 0, %s133
      %s136 = sphi 0, %s135
      %s150 = sphi 0, %s136
      %s156 = sphi 0, %s158
      %s159 = sphi 0, %s156
      %s160 = sphi 0, %s159
      %s176 = sphi 0, %s160
    $region4: #{tpu_custom_call.1} parent=1 // loop_header_branch
      %18 = sbr.rel (%p16) target = $region8
    $region5: #{tpu_custom_call.1} parent=1 // loop_body
      %s20 = ssub.s32 %s15, 1
      %s21 = ssub.s32 %s15, 2
      %s22 = sadd.s32 %s15, 1
      %s23 = ssub.s32 %s15, %s22
      %p24 = scmp.eq.s32.totalorder %s23, 0
      %s26 = sadd.s32 %s25, 1
      %s27 = scalar_select %p24, %s25, %s26
      %p30 = pneg %p24
      %p31 = scmp.eq.s32.totalorder %s15, 1
      %p32 = por %p30, %p31
      %p33 = scmp.ne.s32.totalorder %s25, %s28
      %p34 = scmp.eq.s32.totalorder %s15, 0
      %p35 = por %p33, %p34
      %p36 = scmp.ne.s32.totalorder %s25, %s28
      %p37 = scmp.eq.s32.totalorder %s20, 1
      %p38 = por %p36, %p37
      %p39 = scmp.ne.s32.totalorder %s28, %s29
      %p40 = scmp.eq.s32.totalorder %s20, 0
      %p41 = por %p39, %p40
      %p42 = scmp.ne.s32.totalorder %s28, %s29
      %p43 = scmp.eq.s32.totalorder %s21, 1
      %p44 = por %p42, %p43
      %p46 = scmp.ne.s32.totalorder %s29, %s45
      %p47 = scmp.eq.s32.totalorder %s21, 0
      %p48 = por %p46, %p47
      %s50 = sadd.s32 %s49, 1
      %p53 = scmp.eq.s32.totalorder %s15, 1
      %p54 = scmp.ne.s32.totalorder %s49, %s51
      %p55 = scmp.eq.s32.totalorder %s15, 0
      %p56 = por %p54, %p55
      %p57 = scmp.ne.s32.totalorder %s49, %s51
      %p58 = scmp.eq.s32.totalorder %s20, 1
      %p59 = por %p57, %p58
      %p60 = scmp.ne.s32.totalorder %s51, %s52
      %p61 = scmp.eq.s32.totalorder %s20, 0
      %p62 = por %p60, %p61
      %p63 = scmp.ne.s32.totalorder %s51, %s52
      %p64 = scmp.eq.s32.totalorder %s21, 1
      %p65 = por %p63, %p64
      %p67 = scmp.ne.s32.totalorder %s52, %s66
      %p68 = scmp.eq.s32.totalorder %s21, 0
      %p69 = por %p67, %p68
      %s71 = sadd.s32 %s70, 1
      %p74 = scmp.eq.s32.totalorder %s15, 1
      %p75 = scmp.ne.s32.totalorder %s70, %s72
      %p76 = scmp.eq.s32.totalorder %s15, 0
      %p77 = por %p75, %p76
      %p78 = scmp.ne.s32.totalorder %s70, %s72
      %p79 = scmp.eq.s32.totalorder %s20, 1
      %p80 = por %p78, %p79
      %p81 = scmp.ne.s32.totalorder %s72, %s73
      %p82 = scmp.eq.s32.totalorder %s20, 0
      %p83 = por %p81, %p82
      %p84 = scmp.ne.s32.totalorder %s72, %s73
      %p85 = scmp.eq.s32.totalorder %s21, 1
      %p86 = por %p84, %p85
      %p88 = scmp.ne.s32.totalorder %s73, %s87
      %p89 = scmp.eq.s32.totalorder %s21, 0
      %p90 = por %p88, %p89
      %s92 = sadd.s32 %s91, 1
      %p95 = scmp.eq.s32.totalorder %s15, 1
      %p96 = scmp.ne.s32.totalorder %s91, %s93
      %p97 = scmp.eq.s32.totalorder %s15, 0
      %p98 = por %p96, %p97
      %p99 = scmp.ne.s32.totalorder %s91, %s93
      %p100 = scmp.eq.s32.totalorder %s20, 1
      %p101 = por %p99, %p100
      %p102 = scmp.ne.s32.totalorder %s93, %s94
      %p103 = scmp.eq.s32.totalorder %s20, 0
      %p104 = por %p102, %p103
      %p105 = scmp.ne.s32.totalorder %s93, %s94
      %p106 = scmp.eq.s32.totalorder %s21, 1
      %p107 = por %p105, %p106
      %p109 = scmp.ne.s32.totalorder %s94, %s108
      %p110 = scmp.eq.s32.totalorder %s21, 0
      %p111 = por %p109, %p110
      %s113 = sadd.s32 %s112, 1
      %p116 = scmp.eq.s32.totalorder %s15, 1
      %p117 = scmp.ne.s32.totalorder %s112, %s114
      %p118 = scmp.eq.s32.totalorder %s15, 0
      %p119 = por %p117, %p118
      %p120 = scmp.ne.s32.totalorder %s112, %s114
      %p121 = scmp.eq.s32.totalorder %s20, 1
      %p122 = por %p120, %p121
      %p123 = scmp.ne.s32.totalorder %s114, %s115
      %p124 = scmp.eq.s32.totalorder %s20, 0
      %p125 = por %p123, %p124
      %p126 = scmp.ne.s32.totalorder %s114, %s115
      %p127 = scmp.eq.s32.totalorder %s21, 1
      %p128 = por %p126, %p127
      %p130 = scmp.ne.s32.totalorder %s115, %s129
      %p131 = scmp.eq.s32.totalorder %s21, 0
      %p132 = por %p130, %p131
      %s134 = sadd.s32 %s133, 1
      %p137 = scmp.eq.s32.totalorder %s15, 1
      %p138 = scmp.ne.s32.totalorder %s133, %s135
      %p139 = scmp.eq.s32.totalorder %s15, 0
      %p140 = por %p138, %p139
      %p141 = scmp.ne.s32.totalorder %s133, %s135
      %p142 = scmp.eq.s32.totalorder %s20, 1
      %p143 = por %p141, %p142
      %p144 = scmp.ne.s32.totalorder %s135, %s136
      %p145 = scmp.eq.s32.totalorder %s20, 0
      %p146 = por %p144, %p145
      %p147 = scmp.ne.s32.totalorder %s135, %s136
      %p148 = scmp.eq.s32.totalorder %s21, 1
      %p149 = por %p147, %p148
      %p151 = scmp.ne.s32.totalorder %s136, %s150
      %p152 = scmp.eq.s32.totalorder %s21, 0
      %p153 = por %p151, %p152
      %s154 = ssub.s32 %s15, %s22
      %p155 = scmp.eq.s32.totalorder %s154, 0
      %s157 = sadd.s32 %s156, 1
      %s158 = scalar_select %p155, %s156, %s157
      %p161 = pneg %p155
      %p162 = scmp.eq.s32.totalorder %s15, 1
      %p163 = por %p161, %p162
      %p164 = scmp.ne.s32.totalorder %s156, %s159
      %p165 = scmp.eq.s32.totalorder %s15, 0
      %p166 = por %p164, %p165
      %p167 = scmp.ne.s32.totalorder %s156, %s159
      %p168 = scmp.eq.s32.totalorder %s20, 1
      %p169 = por %p167, %p168
      %p170 = scmp.ne.s32.totalorder %s159, %s160
      %p171 = scmp.eq.s32.totalorder %s20, 0
      %p172 = por %p170, %p171
      %p173 = scmp.ne.s32.totalorder %s159, %s160
      %p174 = scmp.eq.s32.totalorder %s21, 1
      %p175 = por %p173, %p174
      %p177 = scmp.ne.s32.totalorder %s160, %s176
      %p178 = scmp.eq.s32.totalorder %s21, 0
      %p179 = por %p177, %p178
      %p180 = scmp.le.s32.totalorder 1, %s15
      %p181 = scmp.lt.s32.totalorder %s15, 3
      %p182 = pnand %p180, %p181
      %p183 = pneg %p182
      // Predicated region
      $region9: #{tpu_custom_call.1} parent=5 // pred_check
        _
      $region10: #{tpu_custom_call.1} parent=5 // pred_check_branch
        %185 = sbr.rel (%p182) target = $region12
      $region11: #{tpu_custom_call.1} parent=5 // pred_region
        %s186 = ssub.s32 %s15, 1
        // Predicated region
        $region13: #{tpu_custom_call.1} parent=11 // pred_check
          %p187 = pneg %p62
        $region14: #{tpu_custom_call.1} parent=11 // pred_check_branch
          %189 = sbr.rel (%p187) target = $region16
        $region15: #{tpu_custom_call.1} parent=11 // pred_region
          _
        $region16: #{tpu_custom_call.1} parent=11 // pred_fallthru
          _
        // Predicated region
        $region17: #{tpu_custom_call.1} parent=11 // pred_check
          %p190 = pneg %p83
        $region18: #{tpu_custom_call.1} parent=11 // pred_check_branch
          %192 = sbr.rel (%p190) target = $region20
        $region19: #{tpu_custom_call.1} parent=11 // pred_region
          _
        $region20: #{tpu_custom_call.1} parent=11 // pred_fallthru
          _
        // Predicated region
        $region21: #{tpu_custom_call.1} parent=11 // pred_check
          %p193 = pneg %p104
        $region22: #{tpu_custom_call.1} parent=11 // pred_check_branch
          %195 = sbr.rel (%p193) target = $region24
        $region23: #{tpu_custom_call.1} parent=11 // pred_region
          _
        $region24: #{tpu_custom_call.1} parent=11 // pred_fallthru
          _
        // Predicated region
        $region25: #{tpu_custom_call.1} parent=11 // pred_check
          %p196 = pneg %p125
        $region26: #{tpu_custom_call.1} parent=11 // pred_check_branch
          %198 = sbr.rel (%p196) target = $region28
        $region27: #{tpu_custom_call.1} parent=11 // pred_region
          _
        $region28: #{tpu_custom_call.1} parent=11 // pred_fallthru
          _
        // Predicated region
        $region29: #{tpu_custom_call.1} parent=11 // pred_check
          %p199 = pneg %p146
        $region30: #{tpu_custom_call.1} parent=11 // pred_check_branch
          %201 = sbr.rel (%p199) target = $region32
        $region31: #{tpu_custom_call.1} parent=11 // pred_region
          _
        $region32: #{tpu_custom_call.1} parent=11 // pred_fallthru
          _
      $region12: #{tpu_custom_call.1} parent=5 // pred_fallthru
        _
      %p202 = scmp.lt.s32.totalorder %s15, 2
      // Predicated region
      $region33: #{tpu_custom_call.1} parent=5 // pred_check
        %p203 = pneg %p202
      $region34: #{tpu_custom_call.1} parent=5 // pred_check_branch
        %205 = sbr.rel (%p203) target = $region36
      $region35: #{tpu_custom_call.1} parent=5 // pred_region
        // Predicated region
        $region37: #{tpu_custom_call.1} parent=35 // pred_check
          %p206 = pneg %p35
        $region38: #{tpu_custom_call.1} parent=35 // pred_check_branch
          %208 = sbr.rel (%p206) target = $region40
        $region39: #{tpu_custom_call.1} parent=35 // pred_region
          %p209 = scmp.lt.s32.totalorder %s15, 1
          %s210 = scalar_select %p209, %s15, 1
          %s211 = smul.addr %s210, 2
          %s212 = smul.addr %s211, 4
          %s213 = scalar_lea.vmem %s0, %s212
        $region40: #{tpu_custom_call.1} parent=35 // pred_fallthru
          _
      $region36: #{tpu_custom_call.1} parent=5 // pred_fallthru
        _
      %p214 = scmp.le.s32.totalorder 1, %s15
      %p215 = scmp.lt.s32.totalorder %s15, 3
      %p216 = pnand %p214, %p215
      %p217 = pneg %p216
      // Predicated region
      $region41: #{tpu_custom_call.1} parent=5 // pred_check
        _
      $region42: #{tpu_custom_call.1} parent=5 // pred_check_branch
        %219 = sbr.rel (%p216) target = $region44
      $region43: #{tpu_custom_call.1} parent=5 // pred_region
        %s220 = ssub.s32 %s15, 1
        %p221 = scmp.lt.s32.totalorder %s20, 1
        %s222 = scalar_select %p221, %s20, 1
        %s223 = smul.addr %s222, 2
        %s224 = smul.addr %s223, 4
        %s225 = scalar_lea.vmem %s0, %s224
        %p226 = pneg %p41
        %p227 = pneg %p38
        %p228 = pneg %p62
        %p229 = pneg %p59
        %p230 = pneg %p83
        %p231 = pneg %p80
        %p232 = pneg %p104
        %p233 = pneg %p101
        %p234 = pneg %p125
        %p235 = pneg %p122
        %p236 = pneg %p146
        %p237 = pneg %p143
        %p238 = pneg %p172
        %p239 = pneg %p169
        %s240 = sand.u32 %s159, 1
        %s241 = scalar_lea.sflag [#allocation3], %s240
        %s242 = sand.u32 %s159, 1
        %s243 = smul.addr %s242, 8
        %s244 = scalar_lea.vmem [#allocation2], %s243
        %p245 = scmp.lt.s32.totalorder %s20, 1
        %s246 = scalar_select %p245, %s20, 1
        %s247 = smul.addr %s246, 2
        %s248 = smul.addr %s247, 4
        %s249 = scalar_lea.vmem %s0, %s248
        %v250 = vld [vmem:[%s249] sm:$0xff]
        %252 = vst [vmem:[#allocation1] ss:$2 sm:$0xff] %v250
        %v253 = vld.sshfl [vmem:[#allocation1] sm:$0xff pattern:$0x75316420]
        %v254 = vld.sshfl [vmem:[#allocation1 + $0x8] sm:$0xff pattern:$0x75316420]
        %257 = vrot.lane.b32.xlu0 %v253, 17
        %v258 = vpop.permute.xlu0 %257
        %259 = vrot.lane.b32.xlu0 %v254, 17
        %v260 = vpop.permute.xlu0 %259
        %v261 = vlaneseq
        %v262 = vand.u32 %v261, 127
        %vm263 = vcmp.lt.s32.totalorder %v262, 17
        %v264 = vsel %vm263, %v258, %v260
        %v265 = vsel %vm263, %v260, %v258
        %v266 = vld [vmem:[%s5] sm:$0x3]
        %v268 = vperm.slane %v266, 0
        %v269 = vperm.slane %v266, 1
        %v272 = vmul.f32 %v265, %v268
        %v273 = vmul.f32 %v264, %v269
        %v274 = vld [vmem:[%s1] sm:$0xf]
        %275 = vst [vmem:[#allocation1] ss:$2 sm:$0xff] %v250
        %v276 = vld.sshfl [vmem:[#allocation1] sm:$0xff pattern:$0x75316420]
        %v277 = vld.sshfl [vmem:[#allocation1 + $0x8] sm:$0xff pattern:$0x75316420]
        %280 = vrot.lane.b32.xlu0 %v276, 16
        %v281 = vpop.permute.xlu0 %280
        %282 = vrot.lane.b32.xlu0 %v277, 16
        %v283 = vpop.permute.xlu0 %282
        %vm284 = vcmp.lt.s32.totalorder %v262, 16
        %v285 = vsel %vm284, %v281, %v283
        %v286 = vsel %vm284, %v283, %v281
        %s287 = scalar_lea.vmem %s5, 2
        %v288 = vld [vmem:[%s287] sm:$0x3]
        %v290 = vperm.slane %v288, 0
        %v291 = vperm.slane %v288, 1
        %v294 = vmul.f32 %v286, %v290
        %v295 = vmul.f32 %v285, %v291
        %s296 = scalar_lea.vmem %s1, 4
        %v297 = vld [vmem:[%s296] sm:$0xf]
        %vm298 = vcmask 31744
        %v300 = vsel %vm298, %v297, 0
        %vm302 = vcmask 1043456
        %v304 = vsel %vm302, %v294, 0
        %v307 = vsel %vm302, %v295, 0
        %309 = vmatpush.msra.mxu0 0.0
        %310 = vmatpush.msra.mxu0 0.0
        %311 = vmatpush.msra.mxu0 0.0
        %312 = vmatpush.msra.mxu0 0.0
        %313 = vmatpush.msra.mxu0 0.0
        %314 = vmatpush.msra.mxu0 0.0
        %315 = vmatpush.msra.mxu0 0.0
        %316 = vmatpush.msra.mxu0 0.0
        %317 = vmatpush.msra.mxu0 0.0
        %318 = vmatpush.msra.mxu0 0.0
        %319 = vmatpush.msra.mxu0 0.0
        %320 = vmatpush.msra.mxu0 0.0
        %321 = vmatpush.msra.mxu0 0.0
        %322 = vmatpush.msra.mxu0 0.0
        %323 = vmatpush.msra.mxu0 0.0
        %324 = vmatpush.msra.mxu0 %v304
        %325 = vmatmul.f32.gmra.mxu0 %v300
        %v326 = vpop.f32.mrf.mxu0
        %v327 = vadd.f32 0.0, %v326
        %328 = vdwg.mxu0
        %329 = vmatpush.msra.mxu0 0.0
        %330 = vmatpush.msra.mxu0 0.0
        %331 = vmatpush.msra.mxu0 0.0
        %332 = vmatpush.msra.mxu0 0.0
        %333 = vmatpush.msra.mxu0 0.0
        %334 = vmatpush.msra.mxu0 0.0
        %335 = vmatpush.msra.mxu0 0.0
        %336 = vmatpush.msra.mxu0 0.0
        %337 = vmatpush.msra.mxu0 0.0
        %338 = vmatpush.msra.mxu0 0.0
        %339 = vmatpush.msra.mxu0 0.0
        %340 = vmatpush.msra.mxu0 0.0
        %341 = vmatpush.msra.mxu0 0.0
        %342 = vmatpush.msra.mxu0 0.0
        %343 = vmatpush.msra.mxu0 0.0
        %344 = vmatpush.msra.mxu0 %v307
        %345 = vmatmul.f32.gmra.mxu0 %v300
        %v346 = vpop.f32.mrf.mxu0
        %v347 = vadd.f32 0.0, %v346
        %348 = vdwg.mxu0
        %v350 = vsel %vm298, %v274, 0
        %v353 = vsel %vm302, %v272, 0
        %v356 = vsel %vm302, %v273, 0
        %358 = vmatpush.msra.mxu0 0.0
        %359 = vmatpush.msra.mxu0 0.0
        %360 = vmatpush.msra.mxu0 0.0
        %361 = vmatpush.msra.mxu0 0.0
        %362 = vmatpush.msra.mxu0 0.0
        %363 = vmatpush.msra.mxu0 0.0
        %364 = vmatpush.msra.mxu0 0.0
        %365 = vmatpush.msra.mxu0 0.0
        %366 = vmatpush.msra.mxu0 0.0
        %367 = vmatpush.msra.mxu0 0.0
        %368 = vmatpush.msra.mxu0 0.0
        %369 = vmatpush.msra.mxu0 0.0
        %370 = vmatpush.msra.mxu0 0.0
        %371 = vmatpush.msra.mxu0 0.0
        %372 = vmatpush.msra.mxu0 0.0
        %373 = vmatpush.msra.mxu0 %v353
        %374 = vmatmul.f32.gmra.mxu0 %v350
        %v375 = vpop.f32.mrf.mxu0
        %v376 = vadd.f32 %v327, %v375
        %377 = vdwg.mxu0
        %378 = vmatpush.msra.mxu0 0.0
        %379 = vmatpush.msra.mxu0 0.0
        %380 = vmatpush.msra.mxu0 0.0
        %381 = vmatpush.msra.mxu0 0.0
        %382 = vmatpush.msra.mxu0 0.0
        %383 = vmatpush.msra.mxu0 0.0
        %384 = vmatpush.msra.mxu0 0.0
        %385 = vmatpush.msra.mxu0 0.0
        %386 = vmatpush.msra.mxu0 0.0
        %387 = vmatpush.msra.mxu0 0.0
        %388 = vmatpush.msra.mxu0 0.0
        %389 = vmatpush.msra.mxu0 0.0
        %390 = vmatpush.msra.mxu0 0.0
        %391 = vmatpush.msra.mxu0 0.0
        %392 = vmatpush.msra.mxu0 0.0
        %393 = vmatpush.msra.mxu0 %v356
        %394 = vmatmul.f32.gmra.mxu0 %v350
        %v395 = vpop.f32.mrf.mxu0
        %v396 = vadd.f32 %v347, %v395
        %397 = vdwg.mxu0
        %398 = vst [vmem:[#allocation1] ss:$2 sm:$0xff] %v250
        %v399 = vld.sshfl [vmem:[#allocation1] sm:$0xff pattern:$0x75316420]
        %v400 = vld.sshfl [vmem:[#allocation1 + $0x8] sm:$0xff pattern:$0x75316420]
        %403 = vrot.lane.b32.xlu0 %v399, 15
        %v404 = vpop.permute.xlu0 %403
        %405 = vrot.lane.b32.xlu0 %v400, 15
        %v406 = vpop.permute.xlu0 %405
        %vm407 = vcmp.lt.s32.totalorder %v262, 15
        %v408 = vsel %vm407, %v404, %v406
        %v409 = vsel %vm407, %v406, %v404
        %s410 = scalar_lea.vmem %s5, 4
        %v411 = vld [vmem:[%s410] sm:$0x3]
        %v413 = vperm.slane %v411, 0
        %v414 = vperm.slane %v411, 1
        %v417 = vmul.f32 %v409, %v413
        %v418 = vmul.f32 %v408, %v414
        %s419 = scalar_lea.vmem %s1, 8
        %v420 = vld [vmem:[%s419] sm:$0xf]
        %v422 = vsel %vm298, %v420, 0
        %v425 = vsel %vm302, %v417, 0
        %v428 = vsel %vm302, %v418, 0
        %430 = vmatpush.msra.mxu0 0.0
        %431 = vmatpush.msra.mxu0 0.0
        %432 = vmatpush.msra.mxu0 0.0
        %433 = vmatpush.msra.mxu0 0.0
        %434 = vmatpush.msra.mxu0 0.0
        %435 = vmatpush.msra.mxu0 0.0
        %436 = vmatpush.msra.mxu0 0.0
        %437 = vmatpush.msra.mxu0 0.0
        %438 = vmatpush.msra.mxu0 0.0
        %439 = vmatpush.msra.mxu0 0.0
        %440 = vmatpush.msra.mxu0 0.0
        %441 = vmatpush.msra.mxu0 0.0
        %442 = vmatpush.msra.mxu0 0.0
        %443 = vmatpush.msra.mxu0 0.0
        %444 = vmatpush.msra.mxu0 0.0
        %445 = vmatpush.msra.mxu0 %v425
        %446 = vmatmul.f32.gmra.mxu0 %v422
        %v447 = vpop.f32.mrf.mxu0
        %v448 = vadd.f32 0.0, %v447
        %449 = vdwg.mxu0
        %450 = vmatpush.msra.mxu0 0.0
        %451 = vmatpush.msra.mxu0 0.0
        %452 = vmatpush.msra.mxu0 0.0
        %453 = vmatpush.msra.mxu0 0.0
        %454 = vmatpush.msra.mxu0 0.0
        %455 = vmatpush.msra.mxu0 0.0
        %456 = vmatpush.msra.mxu0 0.0
        %457 = vmatpush.msra.mxu0 0.0
        %458 = vmatpush.msra.mxu0 0.0
        %459 = vmatpush.msra.mxu0 0.0
        %460 = vmatpush.msra.mxu0 0.0
        %461 = vmatpush.msra.mxu0 0.0
        %462 = vmatpush.msra.mxu0 0.0
        %463 = vmatpush.msra.mxu0 0.0
        %464 = vmatpush.msra.mxu0 0.0
        %465 = vmatpush.msra.mxu0 %v428
        %466 = vmatmul.f32.gmra.mxu0 %v422
        %v467 = vpop.f32.mrf.mxu0
        %v468 = vadd.f32 0.0, %v467
        %469 = vdwg.mxu0
        %v470 = vadd.f32 %v376, %v448
        %v471 = vadd.f32 %v396, %v468
        %472 = vst [vmem:[#allocation1] ss:$2 sm:$0xff] %v250
        %v473 = vld.sshfl [vmem:[#allocation1] sm:$0xff pattern:$0x75316420]
        %v474 = vld.sshfl [vmem:[#allocation1 + $0x8] sm:$0xff pattern:$0x75316420]
        %477 = vrot.lane.b32.xlu0 %v473, 1
        %v478 = vpop.permute.xlu0 %477
        %479 = vrot.lane.b32.xlu0 %v474, 1
        %v480 = vpop.permute.xlu0 %479
        %vm481 = vcmp.lt.s32.totalorder %v262, 1
        %v482 = vsel %vm481, %v478, %v480
        %v483 = vsel %vm481, %v480, %v478
        %s484 = scalar_lea.vmem %s5, 6
        %v485 = vld [vmem:[%s484] sm:$0x3]
        %v487 = vperm.slane %v485, 0
        %v488 = vperm.slane %v485, 1
        %v491 = vmul.f32 %v483, %v487
        %v492 = vmul.f32 %v482, %v488
        %s493 = scalar_lea.vmem %s1, 12
        %v494 = vld [vmem:[%s493] sm:$0xf]
        %v496 = vsel %vm298, %v494, 0
        %v499 = vsel %vm302, %v491, 0
        %v502 = vsel %vm302, %v492, 0
        %504 = vmatpush.msra.mxu0 0.0
        %505 = vmatpush.msra.mxu0 0.0
        %506 = vmatpush.msra.mxu0 0.0
        %507 = vmatpush.msra.mxu0 0.0
        %508 = vmatpush.msra.mxu0 0.0
        %509 = vmatpush.msra.mxu0 0.0
        %510 = vmatpush.msra.mxu0 0.0
        %511 = vmatpush.msra.mxu0 0.0
        %512 = vmatpush.msra.mxu0 0.0
        %513 = vmatpush.msra.mxu0 0.0
        %514 = vmatpush.msra.mxu0 0.0
        %515 = vmatpush.msra.mxu0 0.0
        %516 = vmatpush.msra.mxu0 0.0
        %517 = vmatpush.msra.mxu0 0.0
        %518 = vmatpush.msra.mxu0 0.0
        %519 = vmatpush.msra.mxu0 %v499
        %520 = vmatmul.f32.gmra.mxu0 %v496
        %v521 = vpop.f32.mrf.mxu0
        %v522 = vadd.f32 0.0, %v521
        %523 = vdwg.mxu0
        %524 = vmatpush.msra.mxu0 0.0
        %525 = vmatpush.msra.mxu0 0.0
        %526 = vmatpush.msra.mxu0 0.0
        %527 = vmatpush.msra.mxu0 0.0
        %528 = vmatpush.msra.mxu0 0.0
        %529 = vmatpush.msra.mxu0 0.0
        %530 = vmatpush.msra.mxu0 0.0
        %531 = vmatpush.msra.mxu0 0.0
        %532 = vmatpush.msra.mxu0 0.0
        %533 = vmatpush.msra.mxu0 0.0
        %534 = vmatpush.msra.mxu0 0.0
        %535 = vmatpush.msra.mxu0 0.0
        %536 = vmatpush.msra.mxu0 0.0
        %537 = vmatpush.msra.mxu0 0.0
        %538 = vmatpush.msra.mxu0 0.0
        %539 = vmatpush.msra.mxu0 %v502
        %540 = vmatmul.f32.gmra.mxu0 %v496
        %v541 = vpop.f32.mrf.mxu0
        %v542 = vadd.f32 0.0, %v541
        %543 = vdwg.mxu0
        %v544 = vadd.f32 %v470, %v522
        %v545 = vadd.f32 %v471, %v542
        %s546 = scalar_lea.vmem %s5, 8
        %v547 = vld [vmem:[%s546] sm:$0x3]
        %v549 = vperm.slane %v547, 0
        %v550 = vperm.slane %v547, 1
        %v553 = vrot.slane %v550, 4
        %v554 = vsel %vm302, %v549, %v553
        %v556 = vmul.f32 %v250, %v554
        %s557 = scalar_lea.vmem %s1, 16
        %v558 = vld [vmem:[%s557] sm:$0xf]
        %560 = vst [vmem:[#allocation1] ss:$2 sm:$0xff] %v556
        %v561 = vld.sshfl [vmem:[#allocation1] sm:$0xff pattern:$0x75316420]
        %v562 = vld.sshfl [vmem:[#allocation1 + $0x8] sm:$0xff pattern:$0x75316420]
        %v564 = vsel %vm298, %v558, 0
        %v566 = vsel %vm302, %v561, 0
        %v568 = vsel %vm302, %v562, 0
        %570 = vmatpush.msra.mxu0 0.0
        %571 = vmatpush.msra.mxu0 0.0
        %572 = vmatpush.msra.mxu0 0.0
        %573 = vmatpush.msra.mxu0 0.0
        %574 = vmatpush.msra.mxu0 0.0
        %575 = vmatpush.msra.mxu0 0.0
        %576 = vmatpush.msra.mxu0 0.0
        %577 = vmatpush.msra.mxu0 0.0
        %578 = vmatpush.msra.mxu0 0.0
        %579 = vmatpush.msra.mxu0 0.0
        %580 = vmatpush.msra.mxu0 0.0
        %581 = vmatpush.msra.mxu0 0.0
        %582 = vmatpush.msra.mxu0 0.0
        %583 = vmatpush.msra.mxu0 0.0
        %584 = vmatpush.msra.mxu0 0.0
        %585 = vmatpush.msra.mxu0 %v566
        %586 = vmatmul.f32.gmra.mxu0 %v564
        %v587 = vpop.f32.mrf.mxu0
        %v588 = vadd.f32 0.0, %v587
        %589 = vdwg.mxu0
        %590 = vmatpush.msra.mxu0 0.0
        %591 = vmatpush.msra.mxu0 0.0
        %592 = vmatpush.msra.mxu0 0.0
        %593 = vmatpush.msra.mxu0 0.0
        %594 = vmatpush.msra.mxu0 0.0
        %595 = vmatpush.msra.mxu0 0.0
        %596 = vmatpush.msra.mxu0 0.0
        %597 = vmatpush.msra.mxu0 0.0
        %598 = vmatpush.msra.mxu0 0.0
        %599 = vmatpush.msra.mxu0 0.0
        %600 = vmatpush.msra.mxu0 0.0
        %601 = vmatpush.msra.mxu0 0.0
        %602 = vmatpush.msra.mxu0 0.0
        %603 = vmatpush.msra.mxu0 0.0
        %604 = vmatpush.msra.mxu0 0.0
        %605 = vmatpush.msra.mxu0 %v568
        %606 = vmatmul.f32.gmra.mxu0 %v564
        %v607 = vpop.f32.mrf.mxu0
        %v608 = vadd.f32 0.0, %v607
        %609 = vdwg.mxu0
        %v610 = vadd.f32 %v544, %v588
        %v611 = vadd.f32 %v545, %v608
        %612 = vst [vmem:[#allocation1] ss:$2 sm:$0xff] %v250
        %v613 = vld.sshfl [vmem:[#allocation1] sm:$0xff pattern:$0x75316420]
        %v614 = vld.sshfl [vmem:[#allocation1 + $0x8] sm:$0xff pattern:$0x75316420]
        %617 = vrot.lane.b32.xlu0 %v613, 127
        %v618 = vpop.permute.xlu0 %617
        %619 = vrot.lane.b32.xlu0 %v614, 127
        %v620 = vpop.permute.xlu0 %619
        %vm621 = vcmp.lt.s32.totalorder %v262, 127
        %v622 = vsel %vm621, %v618, %v620
        %v623 = vsel %vm621, %v620, %v618
        %s624 = scalar_lea.vmem %s5, 10
        %v625 = vld [vmem:[%s624] sm:$0x3]
        %v627 = vperm.slane %v625, 0
        %v628 = vperm.slane %v625, 1
        %v631 = vmul.f32 %v622, %v627
        %v632 = vmul.f32 %v623, %v628
        %s633 = scalar_lea.vmem %s1, 20
        %v634 = vld [vmem:[%s633] sm:$0xf]
        %v636 = vsel %vm298, %v634, 0
        %v639 = vsel %vm302, %v631, 0
        %v642 = vsel %vm302, %v632, 0
        %644 = vmatpush.msra.mxu0 0.0
        %645 = vmatpush.msra.mxu0 0.0
        %646 = vmatpush.msra.mxu0 0.0
        %647 = vmatpush.msra.mxu0 0.0
        %648 = vmatpush.msra.mxu0 0.0
        %649 = vmatpush.msra.mxu0 0.0
        %650 = vmatpush.msra.mxu0 0.0
        %651 = vmatpush.msra.mxu0 0.0
        %652 = vmatpush.msra.mxu0 0.0
        %653 = vmatpush.msra.mxu0 0.0
        %654 = vmatpush.msra.mxu0 0.0
        %655 = vmatpush.msra.mxu0 0.0
        %656 = vmatpush.msra.mxu0 0.0
        %657 = vmatpush.msra.mxu0 0.0
        %658 = vmatpush.msra.mxu0 0.0
        %659 = vmatpush.msra.mxu0 %v639
        %660 = vmatmul.f32.gmra.mxu0 %v636
        %v661 = vpop.f32.mrf.mxu0
        %v662 = vadd.f32 0.0, %v661
        %663 = vdwg.mxu0
        %664 = vmatpush.msra.mxu0 0.0
        %665 = vmatpush.msra.mxu0 0.0
        %666 = vmatpush.msra.mxu0 0.0
        %667 = vmatpush.msra.mxu0 0.0
        %668 = vmatpush.msra.mxu0 0.0
        %669 = vmatpush.msra.mxu0 0.0
        %670 = vmatpush.msra.mxu0 0.0
        %671 = vmatpush.msra.mxu0 0.0
        %672 = vmatpush.msra.mxu0 0.0
        %673 = vmatpush.msra.mxu0 0.0
        %674 = vmatpush.msra.mxu0 0.0
        %675 = vmatpush.msra.mxu0 0.0
        %676 = vmatpush.msra.mxu0 0.0
        %677 = vmatpush.msra.mxu0 0.0
        %678 = vmatpush.msra.mxu0 0.0
        %679 = vmatpush.msra.mxu0 %v642
        %680 = vmatmul.f32.gmra.mxu0 %v636
        %v681 = vpop.f32.mrf.mxu0
        %v682 = vadd.f32 0.0, %v681
        %683 = vdwg.mxu0
        %v684 = vadd.f32 %v610, %v662
        %v685 = vadd.f32 %v611, %v682
        %686 = vst [vmem:[#allocation1] ss:$2 sm:$0xff] %v250
        %v687 = vld.sshfl [vmem:[#allocation1] sm:$0xff pattern:$0x75316420]
        %v688 = vld.sshfl [vmem:[#allocation1 + $0x8] sm:$0xff pattern:$0x75316420]
        %691 = vrot.lane.b32.xlu0 %v687, 113
        %v692 = vpop.permute.xlu0 %691
        %693 = vrot.lane.b32.xlu0 %v688, 113
        %v694 = vpop.permute.xlu0 %693
        %vm695 = vcmp.lt.s32.totalorder %v262, 113
        %v696 = vsel %vm695, %v692, %v694
        %v697 = vsel %vm695, %v694, %v692
        %s698 = scalar_lea.vmem %s5, 12
        %v699 = vld [vmem:[%s698] sm:$0x3]
        %v701 = vperm.slane %v699, 0
        %v702 = vperm.slane %v699, 1
        %v705 = vmul.f32 %v696, %v701
        %v706 = vmul.f32 %v697, %v702
        %s707 = scalar_lea.vmem %s1, 24
        %v708 = vld [vmem:[%s707] sm:$0xf]
        %v710 = vsel %vm298, %v708, 0
        %v713 = vsel %vm302, %v705, 0
        %v716 = vsel %vm302, %v706, 0
        %718 = vmatpush.msra.mxu0 0.0
        %719 = vmatpush.msra.mxu0 0.0
        %720 = vmatpush.msra.mxu0 0.0
        %721 = vmatpush.msra.mxu0 0.0
        %722 = vmatpush.msra.mxu0 0.0
        %723 = vmatpush.msra.mxu0 0.0
        %724 = vmatpush.msra.mxu0 0.0
        %725 = vmatpush.msra.mxu0 0.0
        %726 = vmatpush.msra.mxu0 0.0
        %727 = vmatpush.msra.mxu0 0.0
        %728 = vmatpush.msra.mxu0 0.0
        %729 = vmatpush.msra.mxu0 0.0
        %730 = vmatpush.msra.mxu0 0.0
        %731 = vmatpush.msra.mxu0 0.0
        %732 = vmatpush.msra.mxu0 0.0
        %733 = vmatpush.msra.mxu0 %v713
        %734 = vmatmul.f32.gmra.mxu0 %v710
        %v735 = vpop.f32.mrf.mxu0
        %v736 = vadd.f32 0.0, %v735
        %737 = vdwg.mxu0
        %738 = vmatpush.msra.mxu0 0.0
        %739 = vmatpush.msra.mxu0 0.0
        %740 = vmatpush.msra.mxu0 0.0
        %741 = vmatpush.msra.mxu0 0.0
        %742 = vmatpush.msra.mxu0 0.0
        %743 = vmatpush.msra.mxu0 0.0
        %744 = vmatpush.msra.mxu0 0.0
        %745 = vmatpush.msra.mxu0 0.0
        %746 = vmatpush.msra.mxu0 0.0
        %747 = vmatpush.msra.mxu0 0.0
        %748 = vmatpush.msra.mxu0 0.0
        %749 = vmatpush.msra.mxu0 0.0
        %750 = vmatpush.msra.mxu0 0.0
        %751 = vmatpush.msra.mxu0 0.0
        %752 = vmatpush.msra.mxu0 0.0
        %753 = vmatpush.msra.mxu0 %v716
        %754 = vmatmul.f32.gmra.mxu0 %v710
        %v755 = vpop.f32.mrf.mxu0
        %v756 = vadd.f32 0.0, %v755
        %757 = vdwg.mxu0
        %v758 = vadd.f32 %v684, %v736
        %v759 = vadd.f32 %v685, %v756
        %760 = vst [vmem:[#allocation1] ss:$2 sm:$0xff] %v250
        %v761 = vld.sshfl [vmem:[#allocation1] sm:$0xff pattern:$0x75316420]
        %v762 = vld.sshfl [vmem:[#allocation1 + $0x8] sm:$0xff pattern:$0x75316420]
        %765 = vrot.lane.b32.xlu0 %v761, 112
        %v766 = vpop.permute.xlu0 %765
        %767 = vrot.lane.b32.xlu0 %v762, 112
        %v768 = vpop.permute.xlu0 %767
        %vm769 = vcmp.lt.s32.totalorder %v262, 112
        %v770 = vsel %vm769, %v766, %v768
        %v771 = vsel %vm769, %v768, %v766
        %s772 = scalar_lea.vmem %s5, 14
        %v773 = vld [vmem:[%s772] sm:$0x3]
        %v775 = vperm.slane %v773, 0
        %v776 = vperm.slane %v773, 1
        %v779 = vmul.f32 %v770, %v775
        %v780 = vmul.f32 %v771, %v776
        %s781 = scalar_lea.vmem %s1, 28
        %v782 = vld [vmem:[%s781] sm:$0xf]
        %v784 = vsel %vm298, %v782, 0
        %v787 = vsel %vm302, %v779, 0
        %v790 = vsel %vm302, %v780, 0
        %792 = vmatpush.msra.mxu0 0.0
        %793 = vmatpush.msra.mxu0 0.0
        %794 = vmatpush.msra.mxu0 0.0
        %795 = vmatpush.msra.mxu0 0.0
        %796 = vmatpush.msra.mxu0 0.0
        %797 = vmatpush.msra.mxu0 0.0
        %798 = vmatpush.msra.mxu0 0.0
        %799 = vmatpush.msra.mxu0 0.0
        %800 = vmatpush.msra.mxu0 0.0
        %801 = vmatpush.msra.mxu0 0.0
        %802 = vmatpush.msra.mxu0 0.0
        %803 = vmatpush.msra.mxu0 0.0
        %804 = vmatpush.msra.mxu0 0.0
        %805 = vmatpush.msra.mxu0 0.0
        %806 = vmatpush.msra.mxu0 0.0
        %807 = vmatpush.msra.mxu0 %v787
        %808 = vmatmul.f32.gmra.mxu0 %v784
        %v809 = vpop.f32.mrf.mxu0
        %v810 = vadd.f32 0.0, %v809
        %811 = vdwg.mxu0
        %812 = vmatpush.msra.mxu0 0.0
        %813 = vmatpush.msra.mxu0 0.0
        %814 = vmatpush.msra.mxu0 0.0
        %815 = vmatpush.msra.mxu0 0.0
        %816 = vmatpush.msra.mxu0 0.0
        %817 = vmatpush.msra.mxu0 0.0
        %818 = vmatpush.msra.mxu0 0.0
        %819 = vmatpush.msra.mxu0 0.0
        %820 = vmatpush.msra.mxu0 0.0
        %821 = vmatpush.msra.mxu0 0.0
        %822 = vmatpush.msra.mxu0 0.0
        %823 = vmatpush.msra.mxu0 0.0
        %824 = vmatpush.msra.mxu0 0.0
        %825 = vmatpush.msra.mxu0 0.0
        %826 = vmatpush.msra.mxu0 0.0
        %827 = vmatpush.msra.mxu0 %v790
        %828 = vmatmul.f32.gmra.mxu0 %v784
        %v829 = vpop.f32.mrf.mxu0
        %v830 = vadd.f32 0.0, %v829
        %831 = vdwg.mxu0
        %v832 = vadd.f32 %v758, %v810
        %v833 = vadd.f32 %v759, %v830
        %834 = vst [vmem:[#allocation1] ss:$2 sm:$0xff] %v250
        %v835 = vld.sshfl [vmem:[#allocation1] sm:$0xff pattern:$0x75316420]
        %v836 = vld.sshfl [vmem:[#allocation1 + $0x8] sm:$0xff pattern:$0x75316420]
        %839 = vrot.lane.b32.xlu0 %v835, 111
        %v840 = vpop.permute.xlu0 %839
        %841 = vrot.lane.b32.xlu0 %v836, 111
        %v842 = vpop.permute.xlu0 %841
        %vm843 = vcmp.lt.s32.totalorder %v262, 111
        %v844 = vsel %vm843, %v840, %v842
        %v845 = vsel %vm843, %v842, %v840
        %s846 = scalar_lea.vmem %s5, 16
        %v847 = vld [vmem:[%s846] sm:$0x3]
        %v849 = vperm.slane %v847, 0
        %v850 = vperm.slane %v847, 1
        %v853 = vmul.f32 %v844, %v849
        %v854 = vmul.f32 %v845, %v850
        %s855 = scalar_lea.vmem %s1, 32
        %v856 = vld [vmem:[%s855] sm:$0xf]
        %v858 = vsel %vm298, %v856, 0
        %v861 = vsel %vm302, %v853, 0
        %v864 = vsel %vm302, %v854, 0
        %866 = vmatpush.msra.mxu0 0.0
        %867 = vmatpush.msra.mxu0 0.0
        %868 = vmatpush.msra.mxu0 0.0
        %869 = vmatpush.msra.mxu0 0.0
        %870 = vmatpush.msra.mxu0 0.0
        %871 = vmatpush.msra.mxu0 0.0
        %872 = vmatpush.msra.mxu0 0.0
        %873 = vmatpush.msra.mxu0 0.0
        %874 = vmatpush.msra.mxu0 0.0
        %875 = vmatpush.msra.mxu0 0.0
        %876 = vmatpush.msra.mxu0 0.0
        %877 = vmatpush.msra.mxu0 0.0
        %878 = vmatpush.msra.mxu0 0.0
        %879 = vmatpush.msra.mxu0 0.0
        %880 = vmatpush.msra.mxu0 0.0
        %881 = vmatpush.msra.mxu0 %v861
        %882 = vmatmul.f32.gmra.mxu0 %v858
        %v883 = vpop.f32.mrf.mxu0
        %v884 = vadd.f32 0.0, %v883
        %885 = vdwg.mxu0
        %886 = vmatpush.msra.mxu0 0.0
        %887 = vmatpush.msra.mxu0 0.0
        %888 = vmatpush.msra.mxu0 0.0
        %889 = vmatpush.msra.mxu0 0.0
        %890 = vmatpush.msra.mxu0 0.0
        %891 = vmatpush.msra.mxu0 0.0
        %892 = vmatpush.msra.mxu0 0.0
        %893 = vmatpush.msra.mxu0 0.0
        %894 = vmatpush.msra.mxu0 0.0
        %895 = vmatpush.msra.mxu0 0.0
        %896 = vmatpush.msra.mxu0 0.0
        %897 = vmatpush.msra.mxu0 0.0
        %898 = vmatpush.msra.mxu0 0.0
        %899 = vmatpush.msra.mxu0 0.0
        %900 = vmatpush.msra.mxu0 0.0
        %901 = vmatpush.msra.mxu0 %v864
        %902 = vmatmul.f32.gmra.mxu0 %v858
        %v903 = vpop.f32.mrf.mxu0
        %v904 = vadd.f32 0.0, %v903
        %905 = vdwg.mxu0
        %v906 = vadd.f32 %v832, %v884
        %v907 = vadd.f32 %v833, %v904
        %v908 = vld [vmem:[%s2] sm:$0xf]
        %910 = vset.pattern.permute.xlu0 0
        %911 = vperm.xlu0 %910, %v908
        %v912 = vpop.permute.xlu0 %911
        %v914 = vadd.f32 %v906, %v912
        %v915 = vadd.f32 %v907, %v912
        %v916 = vmax.f32 %v914, 0.0
        %v917 = vmax.f32 %v915, 0.0
        %918 = vrot.lane.b32.xlu0 %v916, 17
        %v919 = vpop.permute.xlu0 %918
        %920 = vrot.lane.b32.xlu0 %v917, 17
        %v921 = vpop.permute.xlu0 %920
        %v922 = vsel %vm263, %v919, %v921
        %v923 = vsel %vm263, %v921, %v919
        %v924 = vmul.f32 %v923, %v268
        %v925 = vmul.f32 %v922, %v269
        %v926 = vld [vmem:[%s3] sm:$0xf]
        %927 = vrot.lane.b32.xlu0 %v916, 16
        %v928 = vpop.permute.xlu0 %927
        %929 = vrot.lane.b32.xlu0 %v917, 16
        %v930 = vpop.permute.xlu0 %929
        %v931 = vsel %vm284, %v928, %v930
        %v932 = vsel %vm284, %v930, %v928
        %v933 = vmul.f32 %v932, %v290
        %v934 = vmul.f32 %v931, %v291
        %s935 = scalar_lea.vmem %s3, 4
        %v936 = vld [vmem:[%s935] sm:$0xf]
        %v938 = vsel %vm298, %v936, 0
        %v941 = vsel %vm302, %v933, 0
        %v944 = vsel %vm302, %v934, 0
        %946 = vmatpush.msra.mxu0 0.0
        %947 = vmatpush.msra.mxu0 0.0
        %948 = vmatpush.msra.mxu0 0.0
        %949 = vmatpush.msra.mxu0 0.0
        %950 = vmatpush.msra.mxu0 0.0
        %951 = vmatpush.msra.mxu0 0.0
        %952 = vmatpush.msra.mxu0 0.0
        %953 = vmatpush.msra.mxu0 0.0
        %954 = vmatpush.msra.mxu0 0.0
        %955 = vmatpush.msra.mxu0 0.0
        %956 = vmatpush.msra.mxu0 0.0
        %957 = vmatpush.msra.mxu0 0.0
        %958 = vmatpush.msra.mxu0 0.0
        %959 = vmatpush.msra.mxu0 0.0
        %960 = vmatpush.msra.mxu0 0.0
        %961 = vmatpush.msra.mxu0 %v941
        %962 = vmatmul.f32.gmra.mxu0 %v938
        %v963 = vpop.f32.mrf.mxu0
        %v964 = vadd.f32 0.0, %v963
        %965 = vdwg.mxu0
        %966 = vmatpush.msra.mxu0 0.0
        %967 = vmatpush.msra.mxu0 0.0
        %968 = vmatpush.msra.mxu0 0.0
        %969 = vmatpush.msra.mxu0 0.0
        %970 = vmatpush.msra.mxu0 0.0
        %971 = vmatpush.msra.mxu0 0.0
        %972 = vmatpush.msra.mxu0 0.0
        %973 = vmatpush.msra.mxu0 0.0
        %974 = vmatpush.msra.mxu0 0.0
        %975 = vmatpush.msra.mxu0 0.0
        %976 = vmatpush.msra.mxu0 0.0
        %977 = vmatpush.msra.mxu0 0.0
        %978 = vmatpush.msra.mxu0 0.0
        %979 = vmatpush.msra.mxu0 0.0
        %980 = vmatpush.msra.mxu0 0.0
        %981 = vmatpush.msra.mxu0 %v944
        %982 = vmatmul.f32.gmra.mxu0 %v938
        %v983 = vpop.f32.mrf.mxu0
        %v984 = vadd.f32 0.0, %v983
        %985 = vdwg.mxu0
        %v987 = vsel %vm298, %v926, 0
        %v990 = vsel %vm302, %v924, 0
        %v993 = vsel %vm302, %v925, 0
        %995 = vmatpush.msra.mxu0 0.0
        %996 = vmatpush.msra.mxu0 0.0
        %997 = vmatpush.msra.mxu0 0.0
        %998 = vmatpush.msra.mxu0 0.0
        %999 = vmatpush.msra.mxu0 0.0
        %1000 = vmatpush.msra.mxu0 0.0
        %1001 = vmatpush.msra.mxu0 0.0
        %1002 = vmatpush.msra.mxu0 0.0
        %1003 = vmatpush.msra.mxu0 0.0
        %1004 = vmatpush.msra.mxu0 0.0
        %1005 = vmatpush.msra.mxu0 0.0
        %1006 = vmatpush.msra.mxu0 0.0
        %1007 = vmatpush.msra.mxu0 0.0
        %1008 = vmatpush.msra.mxu0 0.0
        %1009 = vmatpush.msra.mxu0 0.0
        %1010 = vmatpush.msra.mxu0 %v990
        %1011 = vmatmul.f32.gmra.mxu0 %v987
        %v1012 = vpop.f32.mrf.mxu0
        %v1013 = vadd.f32 %v964, %v1012
        %1014 = vdwg.mxu0
        %1015 = vmatpush.msra.mxu0 0.0
        %1016 = vmatpush.msra.mxu0 0.0
        %1017 = vmatpush.msra.mxu0 0.0
        %1018 = vmatpush.msra.mxu0 0.0
        %1019 = vmatpush.msra.mxu0 0.0
        %1020 = vmatpush.msra.mxu0 0.0
        %1021 = vmatpush.msra.mxu0 0.0
        %1022 = vmatpush.msra.mxu0 0.0
        %1023 = vmatpush.msra.mxu0 0.0
        %1024 = vmatpush.msra.mxu0 0.0
        %1025 = vmatpush.msra.mxu0 0.0
        %1026 = vmatpush.msra.mxu0 0.0
        %1027 = vmatpush.msra.mxu0 0.0
        %1028 = vmatpush.msra.mxu0 0.0
        %1029 = vmatpush.msra.mxu0 0.0
        %1030 = vmatpush.msra.mxu0 %v993
        %1031 = vmatmul.f32.gmra.mxu0 %v987
        %v1032 = vpop.f32.mrf.mxu0
        %v1033 = vadd.f32 %v984, %v1032
        %1034 = vdwg.mxu0
        %1035 = vrot.lane.b32.xlu0 %v916, 15
        %v1036 = vpop.permute.xlu0 %1035
        %1037 = vrot.lane.b32.xlu0 %v917, 15
        %v1038 = vpop.permute.xlu0 %1037
        %v1039 = vsel %vm407, %v1036, %v1038
        %v1040 = vsel %vm407, %v1038, %v1036
        %v1041 = vmul.f32 %v1040, %v413
        %v1042 = vmul.f32 %v1039, %v414
        %s1043 = scalar_lea.vmem %s3, 8
        %v1044 = vld [vmem:[%s1043] sm:$0xf]
        %v1046 = vsel %vm298, %v1044, 0
        %v1049 = vsel %vm302, %v1041, 0
        %v1052 = vsel %vm302, %v1042, 0
        %1054 = vmatpush.msra.mxu0 0.0
        %1055 = vmatpush.msra.mxu0 0.0
        %1056 = vmatpush.msra.mxu0 0.0
        %1057 = vmatpush.msra.mxu0 0.0
        %1058 = vmatpush.msra.mxu0 0.0
        %1059 = vmatpush.msra.mxu0 0.0
        %1060 = vmatpush.msra.mxu0 0.0
        %1061 = vmatpush.msra.mxu0 0.0
        %1062 = vmatpush.msra.mxu0 0.0
        %1063 = vmatpush.msra.mxu0 0.0
        %1064 = vmatpush.msra.mxu0 0.0
        %1065 = vmatpush.msra.mxu0 0.0
        %1066 = vmatpush.msra.mxu0 0.0
        %1067 = vmatpush.msra.mxu0 0.0
        %1068 = vmatpush.msra.mxu0 0.0
        %1069 = vmatpush.msra.mxu0 %v1049
        %1070 = vmatmul.f32.gmra.mxu0 %v1046
        %v1071 = vpop.f32.mrf.mxu0
        %v1072 = vadd.f32 0.0, %v1071
        %1073 = vdwg.mxu0
        %1074 = vmatpush.msra.mxu0 0.0
        %1075 = vmatpush.msra.mxu0 0.0
        %1076 = vmatpush.msra.mxu0 0.0
        %1077 = vmatpush.msra.mxu0 0.0
        %1078 = vmatpush.msra.mxu0 0.0
        %1079 = vmatpush.msra.mxu0 0.0
        %1080 = vmatpush.msra.mxu0 0.0
        %1081 = vmatpush.msra.mxu0 0.0
        %1082 = vmatpush.msra.mxu0 0.0
        %1083 = vmatpush.msra.mxu0 0.0
        %1084 = vmatpush.msra.mxu0 0.0
        %1085 = vmatpush.msra.mxu0 0.0
        %1086 = vmatpush.msra.mxu0 0.0
        %1087 = vmatpush.msra.mxu0 0.0
        %1088 = vmatpush.msra.mxu0 0.0
        %1089 = vmatpush.msra.mxu0 %v1052
        %1090 = vmatmul.f32.gmra.mxu0 %v1046
        %v1091 = vpop.f32.mrf.mxu0
        %v1092 = vadd.f32 0.0, %v1091
        %1093 = vdwg.mxu0
        %v1094 = vadd.f32 %v1013, %v1072
        %v1095 = vadd.f32 %v1033, %v1092
        %1096 = vrot.lane.b32.xlu0 %v916, 1
        %v1097 = vpop.permute.xlu0 %1096
        %1098 = vrot.lane.b32.xlu0 %v917, 1
        %v1099 = vpop.permute.xlu0 %1098
        %v1100 = vsel %vm481, %v1097, %v1099
        %v1101 = vsel %vm481, %v1099, %v1097
        %v1102 = vmul.f32 %v1101, %v487
        %v1103 = vmul.f32 %v1100, %v488
        %s1104 = scalar_lea.vmem %s3, 12
        %v1105 = vld [vmem:[%s1104] sm:$0xf]
        %v1107 = vsel %vm298, %v1105, 0
        %v1110 = vsel %vm302, %v1102, 0
        %v1113 = vsel %vm302, %v1103, 0
        %1115 = vmatpush.msra.mxu0 0.0
        %1116 = vmatpush.msra.mxu0 0.0
        %1117 = vmatpush.msra.mxu0 0.0
        %1118 = vmatpush.msra.mxu0 0.0
        %1119 = vmatpush.msra.mxu0 0.0
        %1120 = vmatpush.msra.mxu0 0.0
        %1121 = vmatpush.msra.mxu0 0.0
        %1122 = vmatpush.msra.mxu0 0.0
        %1123 = vmatpush.msra.mxu0 0.0
        %1124 = vmatpush.msra.mxu0 0.0
        %1125 = vmatpush.msra.mxu0 0.0
        %1126 = vmatpush.msra.mxu0 0.0
        %1127 = vmatpush.msra.mxu0 0.0
        %1128 = vmatpush.msra.mxu0 0.0
        %1129 = vmatpush.msra.mxu0 0.0
        %1130 = vmatpush.msra.mxu0 %v1110
        %1131 = vmatmul.f32.gmra.mxu0 %v1107
        %v1132 = vpop.f32.mrf.mxu0
        %v1133 = vadd.f32 0.0, %v1132
        %1134 = vdwg.mxu0
        %1135 = vmatpush.msra.mxu0 0.0
        %1136 = vmatpush.msra.mxu0 0.0
        %1137 = vmatpush.msra.mxu0 0.0
        %1138 = vmatpush.msra.mxu0 0.0
        %1139 = vmatpush.msra.mxu0 0.0
        %1140 = vmatpush.msra.mxu0 0.0
        %1141 = vmatpush.msra.mxu0 0.0
        %1142 = vmatpush.msra.mxu0 0.0
        %1143 = vmatpush.msra.mxu0 0.0
        %1144 = vmatpush.msra.mxu0 0.0
        %1145 = vmatpush.msra.mxu0 0.0
        %1146 = vmatpush.msra.mxu0 0.0
        %1147 = vmatpush.msra.mxu0 0.0
        %1148 = vmatpush.msra.mxu0 0.0
        %1149 = vmatpush.msra.mxu0 0.0
        %1150 = vmatpush.msra.mxu0 %v1113
        %1151 = vmatmul.f32.gmra.mxu0 %v1107
        %v1152 = vpop.f32.mrf.mxu0
        %v1153 = vadd.f32 0.0, %v1152
        %1154 = vdwg.mxu0
        %v1155 = vadd.f32 %v1094, %v1133
        %v1156 = vadd.f32 %v1095, %v1153
        %v1157 = vmul.f32 %v916, %v549
        %v1158 = vmul.f32 %v917, %v550
        %s1159 = scalar_lea.vmem %s3, 16
        %v1160 = vld [vmem:[%s1159] sm:$0xf]
        %v1162 = vsel %vm298, %v1160, 0
        %v1165 = vsel %vm302, %v1157, 0
        %v1168 = vsel %vm302, %v1158, 0
        %1170 = vmatpush.msra.mxu0 0.0
        %1171 = vmatpush.msra.mxu0 0.0
        %1172 = vmatpush.msra.mxu0 0.0
        %1173 = vmatpush.msra.mxu0 0.0
        %1174 = vmatpush.msra.mxu0 0.0
        %1175 = vmatpush.msra.mxu0 0.0
        %1176 = vmatpush.msra.mxu0 0.0
        %1177 = vmatpush.msra.mxu0 0.0
        %1178 = vmatpush.msra.mxu0 0.0
        %1179 = vmatpush.msra.mxu0 0.0
        %1180 = vmatpush.msra.mxu0 0.0
        %1181 = vmatpush.msra.mxu0 0.0
        %1182 = vmatpush.msra.mxu0 0.0
        %1183 = vmatpush.msra.mxu0 0.0
        %1184 = vmatpush.msra.mxu0 0.0
        %1185 = vmatpush.msra.mxu0 %v1165
        %1186 = vmatmul.f32.gmra.mxu0 %v1162
        %v1187 = vpop.f32.mrf.mxu0
        %v1188 = vadd.f32 0.0, %v1187
        %1189 = vdwg.mxu0
        %1190 = vmatpush.msra.mxu0 0.0
        %1191 = vmatpush.msra.mxu0 0.0
        %1192 = vmatpush.msra.mxu0 0.0
        %1193 = vmatpush.msra.mxu0 0.0
        %1194 = vmatpush.msra.mxu0 0.0
        %1195 = vmatpush.msra.mxu0 0.0
        %1196 = vmatpush.msra.mxu0 0.0
        %1197 = vmatpush.msra.mxu0 0.0
        %1198 = vmatpush.msra.mxu0 0.0
        %1199 = vmatpush.msra.mxu0 0.0
        %1200 = vmatpush.msra.mxu0 0.0
        %1201 = vmatpush.msra.mxu0 0.0
        %1202 = vmatpush.msra.mxu0 0.0
        %1203 = vmatpush.msra.mxu0 0.0
        %1204 = vmatpush.msra.mxu0 0.0
        %1205 = vmatpush.msra.mxu0 %v1168
        %1206 = vmatmul.f32.gmra.mxu0 %v1162
        %v1207 = vpop.f32.mrf.mxu0
        %v1208 = vadd.f32 0.0, %v1207
        %1209 = vdwg.mxu0
        %v1210 = vadd.f32 %v1155, %v1188
        %v1211 = vadd.f32 %v1156, %v1208
        %1212 = vrot.lane.b32.xlu0 %v916, 127
        %v1213 = vpop.permute.xlu0 %1212
        %1214 = vrot.lane.b32.xlu0 %v917, 127
        %v1215 = vpop.permute.xlu0 %1214
        %v1216 = vsel %vm621, %v1213, %v1215
        %v1217 = vsel %vm621, %v1215, %v1213
        %v1218 = vmul.f32 %v1216, %v627
        %v1219 = vmul.f32 %v1217, %v628
        %s1220 = scalar_lea.vmem %s3, 20
        %v1221 = vld [vmem:[%s1220] sm:$0xf]
        %v1223 = vsel %vm298, %v1221, 0
        %v1226 = vsel %vm302, %v1218, 0
        %v1229 = vsel %vm302, %v1219, 0
        %1231 = vmatpush.msra.mxu0 0.0
        %1232 = vmatpush.msra.mxu0 0.0
        %1233 = vmatpush.msra.mxu0 0.0
        %1234 = vmatpush.msra.mxu0 0.0
        %1235 = vmatpush.msra.mxu0 0.0
        %1236 = vmatpush.msra.mxu0 0.0
        %1237 = vmatpush.msra.mxu0 0.0
        %1238 = vmatpush.msra.mxu0 0.0
        %1239 = vmatpush.msra.mxu0 0.0
        %1240 = vmatpush.msra.mxu0 0.0
        %1241 = vmatpush.msra.mxu0 0.0
        %1242 = vmatpush.msra.mxu0 0.0
        %1243 = vmatpush.msra.mxu0 0.0
        %1244 = vmatpush.msra.mxu0 0.0
        %1245 = vmatpush.msra.mxu0 0.0
        %1246 = vmatpush.msra.mxu0 %v1226
        %1247 = vmatmul.f32.gmra.mxu0 %v1223
        %v1248 = vpop.f32.mrf.mxu0
        %v1249 = vadd.f32 0.0, %v1248
        %1250 = vdwg.mxu0
        %1251 = vmatpush.msra.mxu0 0.0
        %1252 = vmatpush.msra.mxu0 0.0
        %1253 = vmatpush.msra.mxu0 0.0
        %1254 = vmatpush.msra.mxu0 0.0
        %1255 = vmatpush.msra.mxu0 0.0
        %1256 = vmatpush.msra.mxu0 0.0
        %1257 = vmatpush.msra.mxu0 0.0
        %1258 = vmatpush.msra.mxu0 0.0
        %1259 = vmatpush.msra.mxu0 0.0
        %1260 = vmatpush.msra.mxu0 0.0
        %1261 = vmatpush.msra.mxu0 0.0
        %1262 = vmatpush.msra.mxu0 0.0
        %1263 = vmatpush.msra.mxu0 0.0
        %1264 = vmatpush.msra.mxu0 0.0
        %1265 = vmatpush.msra.mxu0 0.0
        %1266 = vmatpush.msra.mxu0 %v1229
        %1267 = vmatmul.f32.gmra.mxu0 %v1223
        %v1268 = vpop.f32.mrf.mxu0
        %v1269 = vadd.f32 0.0, %v1268
        %1270 = vdwg.mxu0
        %v1271 = vadd.f32 %v1210, %v1249
        %v1272 = vadd.f32 %v1211, %v1269
        %1273 = vrot.lane.b32.xlu0 %v916, 113
        %v1274 = vpop.permute.xlu0 %1273
        %1275 = vrot.lane.b32.xlu0 %v917, 113
        %v1276 = vpop.permute.xlu0 %1275
        %v1277 = vsel %vm695, %v1274, %v1276
        %v1278 = vsel %vm695, %v1276, %v1274
        %v1279 = vmul.f32 %v1277, %v701
        %v1280 = vmul.f32 %v1278, %v702
        %s1281 = scalar_lea.vmem %s3, 24
        %v1282 = vld [vmem:[%s1281] sm:$0xf]
        %v1284 = vsel %vm298, %v1282, 0
        %v1287 = vsel %vm302, %v1279, 0
        %v1290 = vsel %vm302, %v1280, 0
        %1292 = vmatpush.msra.mxu0 0.0
        %1293 = vmatpush.msra.mxu0 0.0
        %1294 = vmatpush.msra.mxu0 0.0
        %1295 = vmatpush.msra.mxu0 0.0
        %1296 = vmatpush.msra.mxu0 0.0
        %1297 = vmatpush.msra.mxu0 0.0
        %1298 = vmatpush.msra.mxu0 0.0
        %1299 = vmatpush.msra.mxu0 0.0
        %1300 = vmatpush.msra.mxu0 0.0
        %1301 = vmatpush.msra.mxu0 0.0
        %1302 = vmatpush.msra.mxu0 0.0
        %1303 = vmatpush.msra.mxu0 0.0
        %1304 = vmatpush.msra.mxu0 0.0
        %1305 = vmatpush.msra.mxu0 0.0
        %1306 = vmatpush.msra.mxu0 0.0
        %1307 = vmatpush.msra.mxu0 %v1287
        %1308 = vmatmul.f32.gmra.mxu0 %v1284
        %v1309 = vpop.f32.mrf.mxu0
        %v1310 = vadd.f32 0.0, %v1309
        %1311 = vdwg.mxu0
        %1312 = vmatpush.msra.mxu0 0.0
        %1313 = vmatpush.msra.mxu0 0.0
        %1314 = vmatpush.msra.mxu0 0.0
        %1315 = vmatpush.msra.mxu0 0.0
        %1316 = vmatpush.msra.mxu0 0.0
        %1317 = vmatpush.msra.mxu0 0.0
        %1318 = vmatpush.msra.mxu0 0.0
        %1319 = vmatpush.msra.mxu0 0.0
        %1320 = vmatpush.msra.mxu0 0.0
        %1321 = vmatpush.msra.mxu0 0.0
        %1322 = vmatpush.msra.mxu0 0.0
        %1323 = vmatpush.msra.mxu0 0.0
        %1324 = vmatpush.msra.mxu0 0.0
        %1325 = vmatpush.msra.mxu0 0.0
        %1326 = vmatpush.msra.mxu0 0.0
        %1327 = vmatpush.msra.mxu0 %v1290
        %1328 = vmatmul.f32.gmra.mxu0 %v1284
        %v1329 = vpop.f32.mrf.mxu0
        %v1330 = vadd.f32 0.0, %v1329
        %1331 = vdwg.mxu0
        %v1332 = vadd.f32 %v1271, %v1310
        %v1333 = vadd.f32 %v1272, %v1330
        %1334 = vrot.lane.b32.xlu0 %v916, 112
        %v1335 = vpop.permute.xlu0 %1334
        %1336 = vrot.lane.b32.xlu0 %v917, 112
        %v1337 = vpop.permute.xlu0 %1336
        %v1338 = vsel %vm769, %v1335, %v1337
        %v1339 = vsel %vm769, %v1337, %v1335
        %v1340 = vmul.f32 %v1338, %v775
        %v1341 = vmul.f32 %v1339, %v776
        %s1342 = scalar_lea.vmem %s3, 28
        %v1343 = vld [vmem:[%s1342] sm:$0xf]
        %v1345 = vsel %vm298, %v1343, 0
        %v1348 = vsel %vm302, %v1340, 0
        %v1351 = vsel %vm302, %v1341, 0
        %1353 = vmatpush.msra.mxu0 0.0
        %1354 = vmatpush.msra.mxu0 0.0
        %1355 = vmatpush.msra.mxu0 0.0
        %1356 = vmatpush.msra.mxu0 0.0
        %1357 = vmatpush.msra.mxu0 0.0
        %1358 = vmatpush.msra.mxu0 0.0
        %1359 = vmatpush.msra.mxu0 0.0
        %1360 = vmatpush.msra.mxu0 0.0
        %1361 = vmatpush.msra.mxu0 0.0
        %1362 = vmatpush.msra.mxu0 0.0
        %1363 = vmatpush.msra.mxu0 0.0
        %1364 = vmatpush.msra.mxu0 0.0
        %1365 = vmatpush.msra.mxu0 0.0
        %1366 = vmatpush.msra.mxu0 0.0
        %1367 = vmatpush.msra.mxu0 0.0
        %1368 = vmatpush.msra.mxu0 %v1348
        %1369 = vmatmul.f32.gmra.mxu0 %v1345
        %v1370 = vpop.f32.mrf.mxu0
        %v1371 = vadd.f32 0.0, %v1370
        %1372 = vdwg.mxu0
        %1373 = vmatpush.msra.mxu0 0.0
        %1374 = vmatpush.msra.mxu0 0.0
        %1375 = vmatpush.msra.mxu0 0.0
        %1376 = vmatpush.msra.mxu0 0.0
        %1377 = vmatpush.msra.mxu0 0.0
        %1378 = vmatpush.msra.mxu0 0.0
        %1379 = vmatpush.msra.mxu0 0.0
        %1380 = vmatpush.msra.mxu0 0.0
        %1381 = vmatpush.msra.mxu0 0.0
        %1382 = vmatpush.msra.mxu0 0.0
        %1383 = vmatpush.msra.mxu0 0.0
        %1384 = vmatpush.msra.mxu0 0.0
        %1385 = vmatpush.msra.mxu0 0.0
        %1386 = vmatpush.msra.mxu0 0.0
        %1387 = vmatpush.msra.mxu0 0.0
        %1388 = vmatpush.msra.mxu0 %v1351
        %1389 = vmatmul.f32.gmra.mxu0 %v1345
        %v1390 = vpop.f32.mrf.mxu0
        %v1391 = vadd.f32 0.0, %v1390
        %1392 = vdwg.mxu0
        %v1393 = vadd.f32 %v1332, %v1371
        %v1394 = vadd.f32 %v1333, %v1391
        %1395 = vrot.lane.b32.xlu0 %v916, 111
        %v1396 = vpop.permute.xlu0 %1395
        %1397 = vrot.lane.b32.xlu0 %v917, 111
        %v1398 = vpop.permute.xlu0 %1397
        %v1399 = vsel %vm843, %v1396, %v1398
        %v1400 = vsel %vm843, %v1398, %v1396
        %v1401 = vmul.f32 %v1399, %v849
        %v1402 = vmul.f32 %v1400, %v850
        %s1403 = scalar_lea.vmem %s3, 32
        %v1404 = vld [vmem:[%s1403] sm:$0xf]
        %v1406 = vsel %vm298, %v1404, 0
        %v1409 = vsel %vm302, %v1401, 0
        %v1412 = vsel %vm302, %v1402, 0
        %1414 = vmatpush.msra.mxu0 0.0
        %1415 = vmatpush.msra.mxu0 0.0
        %1416 = vmatpush.msra.mxu0 0.0
        %1417 = vmatpush.msra.mxu0 0.0
        %1418 = vmatpush.msra.mxu0 0.0
        %1419 = vmatpush.msra.mxu0 0.0
        %1420 = vmatpush.msra.mxu0 0.0
        %1421 = vmatpush.msra.mxu0 0.0
        %1422 = vmatpush.msra.mxu0 0.0
        %1423 = vmatpush.msra.mxu0 0.0
        %1424 = vmatpush.msra.mxu0 0.0
        %1425 = vmatpush.msra.mxu0 0.0
        %1426 = vmatpush.msra.mxu0 0.0
        %1427 = vmatpush.msra.mxu0 0.0
        %1428 = vmatpush.msra.mxu0 0.0
        %1429 = vmatpush.msra.mxu0 %v1409
        %1430 = vmatmul.f32.gmra.mxu0 %v1406
        %v1431 = vpop.f32.mrf.mxu0
        %v1432 = vadd.f32 0.0, %v1431
        %1433 = vdwg.mxu0
        %1434 = vmatpush.msra.mxu0 0.0
        %1435 = vmatpush.msra.mxu0 0.0
        %1436 = vmatpush.msra.mxu0 0.0
        %1437 = vmatpush.msra.mxu0 0.0
        %1438 = vmatpush.msra.mxu0 0.0
        %1439 = vmatpush.msra.mxu0 0.0
        %1440 = vmatpush.msra.mxu0 0.0
        %1441 = vmatpush.msra.mxu0 0.0
        %1442 = vmatpush.msra.mxu0 0.0
        %1443 = vmatpush.msra.mxu0 0.0
        %1444 = vmatpush.msra.mxu0 0.0
        %1445 = vmatpush.msra.mxu0 0.0
        %1446 = vmatpush.msra.mxu0 0.0
        %1447 = vmatpush.msra.mxu0 0.0
        %1448 = vmatpush.msra.mxu0 0.0
        %1449 = vmatpush.msra.mxu0 %v1412
        %1450 = vmatmul.f32.gmra.mxu0 %v1406
        %v1451 = vpop.f32.mrf.mxu0
        %v1452 = vadd.f32 0.0, %v1451
        %1453 = vdwg.mxu0
        %v1454 = vadd.f32 %v1393, %v1432
        %v1455 = vadd.f32 %v1394, %v1452
        %v1456 = vld [vmem:[%s4] sm:$0xf]
        %1458 = vset.pattern.permute.xlu0 0
        %1459 = vperm.xlu0 %1458, %v1456
        %v1460 = vpop.permute.xlu0 %1459
        %v1462 = vadd.f32 %v1454, %v1460
        %v1463 = vadd.f32 %v1455, %v1460
        %1464 = vst [vmem:[#allocation1] ss:$2 sm:$0xff] %v250
        %v1465 = vld.sshfl [vmem:[#allocation1] sm:$0xff pattern:$0x75316420]
        %v1466 = vld.sshfl [vmem:[#allocation1 + $0x8] sm:$0xff pattern:$0x75316420]
        %v1469 = vadd.f32 %v1462, %v1465
        %v1470 = vadd.f32 %v1463, %v1466
        %v1473 = vrot.slane %v1470, 4
        %v1474 = vsel %vm302, %v1469, %v1473
        %1476 = vst [vmem:[%s244] sm:$0xff] %v1474
        %s1477 = sand.u32 %s159, 1
        %s1478 = scalar_lea.sflag [#allocation3], %s1477
        %s1479 = sand.u32 %s159, 1
        %s1480 = smul.addr %s1479, 8
        %s1481 = scalar_lea.vmem [#allocation2], %s1480
        // Predicated region
        $region45: #{tpu_custom_call.1} parent=43 // pred_check
          %p1482 = pneg %p169
        $region46: #{tpu_custom_call.1} parent=43 // pred_check_branch
          %1484 = sbr.rel (%p1482) target = $region48
        $region47: #{tpu_custom_call.1} parent=43 // pred_region
          %1486 = vsyncadd %s1478, 0
          %s1487 = smul.addr %s20, 2
          %s1488 = smul.addr %s1487, 4
          %s1489 = scalar_lea.hbm %s6, %s1488
          %s1491 = sshll.u32 %s1481, 4
          %s1492 = int_to_ptr.vmem [resolvable:$true] %s1491
          %s1493 = sshll.u32 %s1489, 4
          %s1494 = int_to_ptr.hbm [resolvable:$true] %s1493
          %1496 = dma.vmem_to_hbm [thread:$0]  %s1492, 128, %s1494, %s1478
        $region48: #{tpu_custom_call.1} parent=43 // pred_fallthru
          _
      $region44: #{tpu_custom_call.1} parent=5 // pred_fallthru
        _
      %p1497 = scmp.le.s32.totalorder 2, %s15
      // Predicated region
      $region49: #{tpu_custom_call.1} parent=5 // pred_check
        %p1498 = pneg %p1497
      $region50: #{tpu_custom_call.1} parent=5 // pred_check_branch
        %1500 = sbr.rel (%p1498) target = $region52
      $region51: #{tpu_custom_call.1} parent=5 // pred_region
        %s1501 = ssub.s32 %s15, 2
        // Predicated region
        $region53: #{tpu_custom_call.1} parent=51 // pred_check
          %p1502 = pneg %p175
        $region54: #{tpu_custom_call.1} parent=51 // pred_check_branch
          %1504 = sbr.rel (%p1502) target = $region56
        $region55: #{tpu_custom_call.1} parent=51 // pred_region
          %s1505 = sand.u32 %s160, 1
          %s1506 = scalar_lea.sflag [#allocation3], %s1505
          %s1507 = sand.u32 %s160, 1
          %s1508 = smul.addr %s1507, 8
          %s1509 = scalar_lea.vmem [#allocation2], %s1508
          %1511 = dma.done %s1506, 128
        $region56: #{tpu_custom_call.1} parent=51 // pred_fallthru
          _
      $region52: #{tpu_custom_call.1} parent=5 // pred_fallthru
        _
    $region6: #{tpu_custom_call.1} parent=1 // loop_footer
      %s19 = sadd.s32 1, %s15
    $region7: #{tpu_custom_call.1} parent=1 // loop_footer_branch
      %14 = sbr.rel target = $region3
    $region8: #{tpu_custom_call.1} parent=1 // loop_exit
      _
    %1512 = vsyncpa [#allocation3], 1
    %s1513 = scalar_lea.sflag [#allocation3], 1
    %1514 = vsyncpa %s1513, 1

</llo_original>
